<compile_context>
chip_gen: v5e
topology: v5e:2x2
jax: 0.10.0
libtpu: 0.0.40
codegen_flags: <defaults>
</compile_context>

<pallas_src>
import functools

import jax
import jax.numpy as jnp
import numpy as np
from jax.experimental import pallas as pl
from jax.experimental.pallas import tpu as pltpu


def _round_up(x, m):
    return (x + m - 1) // m * m


# ----------------------------------------------------------------------------
# Kernel
# ----------------------------------------------------------------------------
def _gnn_cell_kernel(a_in_ref, a_out_ref, h_ref,
                     w_edge_ref, b_edge_ref, b_ah_ref,
                     w_ih_ref, b_ih_ref, w_hh_ref, b_hh_ref,
                     out_ref, *, bt, n_pad, h_pad, matmul_dtype):
    """One GNNCell update for a block of `bt` graphs; grid = (batch_blocks, step).

    The GRU step axis is the inner "arbitrary" grid axis: the hidden state is
    resident in the output block across steps, so A / weights are only DMA'd
    once per batch block (their block index does not change along the step
    axis).  All lane dims are multiples of 128 -> only 4 MXU matmul groups per
    block (fused edge, 2x propagation, fused gi, fused gh) and lane-dense
    stores.
    """
    f32 = jnp.float32
    s = pl.program_id(1)

    @pl.when(s == 0)
    def _():
        out_ref[...] = h_ref[...]            # seed resident hidden state

    h3 = out_ref[...]                        # (bt, n_pad, h_pad) f32
    h2 = h3.reshape(bt * n_pad, h_pad)       # free: n_pad % 8 == 0, h_pad % 128 == 0
    hm = h2.astype(matmul_dtype)

    # Fused linear_edge_in / linear_edge_out: one (bt*N, Hp) x (Hp, 2Hp) matmul.
    edge = jnp.dot(hm, w_edge_ref[...], preferred_element_type=f32) + b_edge_ref[...]
    edge3 = edge.reshape(bt, n_pad, 2 * h_pad).astype(matmul_dtype)
    ein = edge3[:, :, :h_pad]                # 128-aligned lane slices
    eout = edge3[:, :, h_pad:]

    # Graph propagation: per-graph adjacency matmuls (contraction over nodes).
    prop_in = jnp.einsum("bnm,bmh->bnh", a_in_ref[...], ein,
                         preferred_element_type=f32)
    prop_out = jnp.einsum("bnm,bmh->bnh", a_out_ref[...], eout,
                          preferred_element_type=f32)

    # inputs = [input_in | input_out] on the (128-aligned) lane axis.
    inputs = jnp.concatenate([prop_in, prop_out], axis=-1) + b_ah_ref[...]
    im = inputs.reshape(bt * n_pad, 2 * h_pad).astype(matmul_dtype)

    # Fused GRU gates: one (.,2Hp)x(2Hp,3Hp) and one (.,Hp)x(Hp,3Hp) matmul.
    gi = jnp.dot(im, w_ih_ref[...], preferred_element_type=f32) + b_ih_ref[...]
    gh = jnp.dot(hm, w_hh_ref[...], preferred_element_type=f32) + b_hh_ref[...]

    i_r, i_i, i_n = gi[:, :h_pad], gi[:, h_pad:2 * h_pad], gi[:, 2 * h_pad:]
    h_r, h_i, h_n = gh[:, :h_pad], gh[:, h_pad:2 * h_pad], gh[:, 2 * h_pad:]

    resetgate = jax.nn.sigmoid(i_r + h_r)
    inputgate = jax.nn.sigmoid(i_i + h_i)
    newgate = jnp.tanh(i_n + resetgate * h_n)
    hy = newgate + inputgate * (h2 - newgate)          # (bt*n_pad, h_pad) f32
    out_ref[...] = hy.reshape(bt, n_pad, h_pad)        # lane-dense store


# ----------------------------------------------------------------------------
# Host-side parameter packing (pre-transpose, pre-pad, gate-major packing)
# ----------------------------------------------------------------------------
def prepare_params(params, matmul_dtype=jnp.bfloat16):
    md = jnp.dtype(matmul_dtype)
    f32 = jnp.float32
    H = params["w_hh"].shape[1]
    Hp = _round_up(H, 128)

    w_edge = jnp.zeros((Hp, 2 * Hp), f32)
    w_edge = w_edge.at[:H, :H].set(params["w_edge_in"].T)
    w_edge = w_edge.at[:H, Hp:Hp + H].set(params["w_edge_out"].T)

    b_edge = jnp.zeros((1, 2 * Hp), f32)
    b_edge = b_edge.at[0, :H].set(params["b_edge_in"])
    b_edge = b_edge.at[0, Hp:Hp + H].set(params["b_edge_out"])

    b_ah = jnp.zeros((1, 2 * Hp), f32)
    b_ah = b_ah.at[0, :H].set(params["b_iah"])
    b_ah = b_ah.at[0, Hp:Hp + H].set(params["b_oah"])

    w_ih_t = params["w_ih"].T            # (2H, 3H): rows = [in | out], cols = [r|i|n]
    w_hh_t = params["w_hh"].T            # (H, 3H)
    w_ih = jnp.zeros((2 * Hp, 3 * Hp), f32)
    w_hh = jnp.zeros((Hp, 3 * Hp), f32)
    b_ih = jnp.zeros((1, 3 * Hp), f32)
    b_hh = jnp.zeros((1, 3 * Hp), f32)
    for g in range(3):
        w_ih = w_ih.at[:H, g * Hp:g * Hp + H].set(w_ih_t[:H, g * H:(g + 1) * H])
        w_ih = w_ih.at[Hp:Hp + H, g * Hp:g * Hp + H].set(w_ih_t[H:2 * H, g * H:(g + 1) * H])
        w_hh = w_hh.at[:H, g * Hp:g * Hp + H].set(w_hh_t[:, g * H:(g + 1) * H])
        b_ih = b_ih.at[0, g * Hp:g * Hp + H].set(params["b_ih"][g * H:(g + 1) * H])
        b_hh = b_hh.at[0, g * Hp:g * Hp + H].set(params["b_hh"][g * H:(g + 1) * H])

    return dict(w_edge=w_edge.astype(md), b_edge=b_edge, b_ah=b_ah,
                w_ih=w_ih.astype(md), b_ih=b_ih,
                w_hh=w_hh.astype(md), b_hh=b_hh, h_pad=Hp)


# ----------------------------------------------------------------------------
# Generation-aware block selection
# ----------------------------------------------------------------------------
def _chip_info():
    """Best-effort (TensorCores/chip, conservative VMEM tile budget)."""
    num_tc, budget = 1, 16 * 1024 * 1024          # v5e-ish conservative default
    try:
        kind = jax.devices()[0].device_kind.lower()
    except Exception:
        kind = ""
    if "v6" in kind:                               # v6e: 1 TC, 32 MiB scoped default
        num_tc, budget = 1, 32 * 1024 * 1024
    elif "7" in kind:                              # v7x: 2 TCs, 64 MiB physical/TC
        num_tc, budget = 2, 24 * 1024 * 1024
    elif "v4" in kind or "v5p" in kind:            # megacore parts
        num_tc, budget = 2, 32 * 1024 * 1024
    try:
        cap = int(pltpu.get_tpu_info().vmem_capacity_bytes)
        budget = min(budget, max(cap // 4, 8 * 1024 * 1024))
    except Exception:
        pass
    return num_tc, budget


def _choose_block_b(B, n_pad, h_pad, md_itemsize, num_tc, budget):
    # Per-graph VMEM: double-buffered A_in/A_out + hidden-in/out tiles, plus the
    # dominant in-kernel f32 intermediates (edge/inputs/gi/gh ~ 14*Np*Hp) and
    # the matmul-dtype casts of the MXU LHS operands.
    per_graph = (4 * n_pad * n_pad * md_itemsize
                 + 4 * n_pad * h_pad * 4
                 + 14 * n_pad * h_pad * 4
                 + 5 * n_pad * h_pad * md_itemsize)
    bt = max(1, min(B, budget // max(per_graph, 1)))
    if num_tc > 1 and B >= 2 * num_tc:
        # v7x megacore: keep >= 2 batch-axis grid iterations per TensorCore so
        # BlockSpec double-buffering overlaps the A/hidden DMAs with compute.
        bt = min(bt, B // (2 * num_tc))
    return max(1, bt)


# ----------------------------------------------------------------------------
# Forward wrapper (matches GNN.forward for the full-GRU configuration)
# ----------------------------------------------------------------------------
def gnn_forward(A, hidden, params, step=1, matmul_dtype=jnp.bfloat16, block_b=None):
    """A: (B, N, 2N) = [in-adjacency | out-adjacency];  hidden: (B, N, H)."""
    B, N, H = hidden.shape
    assert A.shape == (B, N, 2 * N)
    md = jnp.dtype(matmul_dtype)
    f32 = jnp.float32

    n_pad = _round_up(N, 8)              # sublane-aligned -> in-kernel reshapes are free
    prepped = prepare_params(params, matmul_dtype=md)
    h_pad = prepped["h_pad"]             # lane-aligned (multiple of 128)

    num_tc, budget = _chip_info()
    if block_b is None:
        block_b = _choose_block_b(B, n_pad, h_pad, md.itemsize, num_tc, budget)
    bt = max(1, min(block_b, B))
    b_pad = _round_up(B, bt)             # pad B instead of shrinking bt to a divisor

    a_in = jnp.zeros((b_pad, n_pad, n_pad), md).at[:B, :N, :N].set(A[:, :, :N].astype(md))
    a_out = jnp.zeros((b_pad, n_pad, n_pad), md).at[:B, :N, :N].set(A[:, :, N:2 * N].astype(md))
    h0 = jnp.zeros((b_pad, n_pad, h_pad), f32).at[:B, :N, :H].set(hidden.astype(f32))

    grid = (b_pad // bt, step)

    kernel = functools.partial(_gnn_cell_kernel, bt=bt, n_pad=n_pad, h_pad=h_pad,
                               matmul_dtype=md)

    batch_spec = lambda shape: pl.BlockSpec(shape, lambda b, s: (b, 0, 0))
    const_spec = lambda shape: pl.BlockSpec(shape, lambda b, s: (0,) * len(shape))
    # TODO(synk): pipeline_mode=pl.Buffered(1) on the constant weight specs would
    # halve their VMEM footprint; kept at default double-buffering for robustness.

    args = (a_in, a_out, h0,
            prepped["w_edge"], prepped["b_edge"], prepped["b_ah"],
            prepped["w_ih"], prepped["b_ih"], prepped["w_hh"], prepped["b_hh"])

    flops = int(b_pad * step * (22 * n_pad * h_pad * h_pad + 4 * n_pad * n_pad * h_pad))
    transcendentals = int(3 * b_pad * step * n_pad * h_pad)
    bytes_accessed = int(sum(int(x.size) * x.dtype.itemsize for x in args)
                         + b_pad * n_pad * h_pad * 4)

    weight_bytes = 2 * sum(int(prepped[k].size) * prepped[k].dtype.itemsize
                           for k in ("w_edge", "b_edge", "b_ah", "w_ih", "b_ih",
                                     "w_hh", "b_hh"))
    tile_bytes = bt * (4 * n_pad * n_pad * md.itemsize + 4 * n_pad * h_pad * 4)
    interm_bytes = bt * n_pad * (14 * h_pad * 4 + 5 * h_pad * md.itemsize)
    vmem_need = tile_bytes + weight_bytes + interm_bytes
    cp_kwargs = dict(dimension_semantics=("parallel", "arbitrary"))
    if vmem_need > 14 * 1024 * 1024:
        # Leave headroom below v7x's 64 MiB physical VMEM per TensorCore.
        cp_kwargs["vmem_limit_bytes"] = int(min(2 * vmem_need, 48 * 1024 * 1024))

    out = pl.pallas_call(
        kernel,
        out_shape=jax.ShapeDtypeStruct((b_pad, n_pad, h_pad), f32),
        grid=grid,
        in_specs=[
            batch_spec((bt, n_pad, n_pad)),        # A_in
            batch_spec((bt, n_pad, n_pad)),        # A_out
            batch_spec((bt, n_pad, h_pad)),        # hidden (read only at step 0)
            const_spec((h_pad, 2 * h_pad)),        # w_edge   [in | out], pre-transposed
            const_spec((1, 2 * h_pad)),            # b_edge
            const_spec((1, 2 * h_pad)),            # [b_iah | b_oah]
            const_spec((2 * h_pad, 3 * h_pad)),    # w_ih     gate-major, pre-transposed
            const_spec((1, 3 * h_pad)),            # b_ih
            const_spec((h_pad, 3 * h_pad)),        # w_hh
            const_spec((1, 3 * h_pad)),            # b_hh
        ],
        out_specs=batch_spec((bt, n_pad, h_pad)),
        compiler_params=pltpu.CompilerParams(**cp_kwargs),
        cost_estimate=pl.CostEstimate(flops=flops,
                                      transcendentals=transcendentals,
                                      bytes_accessed=bytes_accessed),
        input_output_aliases={2: 0},   # padded hidden buffer doubles as the output
    )(*args)

    return out[:B, :N, :H]
    # TODO(synk): non-GRU branch and gate_size_mult in {0,1,2} branches of GNNCell
    # are cur_key-config dependent; only the standard full-GRU path is kernelized.
    # TODO(synk): bf16 path rounds intermediates (edge -> prop -> gates) to bf16
    # between MXU stages; error compounds mildly with `step` (f32 path is exact).


# ----------------------------------------------------------------------------
# Pure-JAX reference (mirrors the PyTorch GNNCell, full GRU branch)
# ----------------------------------------------------------------------------
def gnn_reference(A, hidden, params, step=1):
    N = A.shape[1]
    H = hidden.shape[-1]
    for _ in range(step):
        edge_in = hidden @ params["w_edge_in"].T + params["b_edge_in"]
        edge_out = hidden @ params["w_edge_out"].T + params["b_edge_out"]
        input_in = jnp.matmul(A[:, :, :N], edge_in) + params["b_iah"]
        input_out = jnp.matmul(A[:, :, N:2 * N], edge_out) + params["b_oah"]
        inputs = jnp.concatenate([input_in, input_out], axis=2)
        gi = inputs @ params["w_ih"].T + params["b_ih"]
        gh = hidden @ params["w_hh"].T + params["b_hh"]
        i_r, i_i, i_n = gi[..., :H], gi[..., H:2 * H], gi[..., 2 * H:]
        h_r, h_i, h_n = gh[..., :H], gh[..., H:2 * H], gh[..., 2 * H:]
        resetgate = jax.nn.sigmoid(i_r + h_r)
        inputgate = jax.nn.sigmoid(i_i + h_i)
        newgate = jnp.tanh(i_n + resetgate * h_n)
        hidden = newgate + inputgate * (hidden - newgate)
    return hidden


def init_params(key, hidden_size):
    """Deterministic parameter init (uniform(-stdv, stdv), like the PyTorch reset)."""
    H = hidden_size
    stdv = 1.0 / np.sqrt(H)
    shapes = {
        "w_ih": (3 * H, 2 * H),
        "w_hh": (3 * H, H),
        "b_ih": (3 * H,),
        "b_hh": (3 * H,),
        "b_iah": (H,),
        "b_oah": (H,),
        "w_edge_in": (H, H),
        "b_edge_in": (H,),
        "w_edge_out": (H, H),
        "b_edge_out": (H,),
    }
    params = {}
    for name, shape in sorted(shapes.items()):
        key, sub = jax.random.split(key)
        params[name] = jax.random.uniform(sub, shape, jnp.float32, -stdv, stdv)
    return params


if __name__ == "__main__":
    B, N, H = 4, 8, 32          # batch (sessions), nodes per session, hidden_size

    key = jax.random.PRNGKey(0)
    k_a, k_h, k_p = jax.random.split(key, 3)

    # Synthetic normalized adjacency [B, N, 2N] and node embeddings [B, N, H].
    A_raw = (jax.random.uniform(k_a, (B, N, 2 * N)) > 0.7).astype(jnp.float32)
    deg = jnp.maximum(A_raw.sum(axis=2, keepdims=True), 1.0)
    A = A_raw / deg
    hidden = jax.random.normal(k_h, (B, N, H), jnp.float32)

    params = init_params(k_p, H)

    # f32 path, single step.
    out1 = jax.block_until_ready(
        gnn_forward(A, hidden, params, step=1, matmul_dtype=jnp.float32))
    ref1 = gnn_reference(A, hidden, params, step=1)
    np.testing.assert_allclose(np.asarray(out1), np.asarray(ref1), rtol=2e-3, atol=2e-3)

    # f32 path, two steps (exercises the resident hidden state across the step axis).
    out2 = jax.block_until_ready(
        gnn_forward(A, hidden, params, step=2, matmul_dtype=jnp.float32))
    ref2 = gnn_reference(A, hidden, params, step=2)
    np.testing.assert_allclose(np.asarray(out2), np.asarray(ref2), rtol=2e-3, atol=2e-3)

    # Default bf16 MXU-input fast path: relaxed tolerance vs the f32 reference.
    out_bf16 = jax.block_until_ready(gnn_forward(A, hidden, params, step=1))
    np.testing.assert_allclose(np.asarray(out_bf16), np.asarray(ref1),
                               rtol=5e-2, atol=5e-2)

    print("KERNEL_OK")
</pallas_src>

<mosaic_0001>
module attributes {stable_mosaic.version = 11 : i64} {
  func.func @_gnn_cell_kernel(%arg0: i32, %arg1: i32, %arg2: memref<4x8x8xf32, #tpu.memory_space<vmem>>, %arg3: memref<4x8x8xf32, #tpu.memory_space<vmem>>, %arg4: memref<4x8x128xf32, #tpu.memory_space<vmem>>, %arg5: memref<128x256xf32, #tpu.memory_space<vmem>>, %arg6: memref<1x256xf32, #tpu.memory_space<vmem>>, %arg7: memref<1x256xf32, #tpu.memory_space<vmem>>, %arg8: memref<256x384xf32, #tpu.memory_space<vmem>>, %arg9: memref<1x384xf32, #tpu.memory_space<vmem>>, %arg10: memref<128x384xf32, #tpu.memory_space<vmem>>, %arg11: memref<1x384xf32, #tpu.memory_space<vmem>>, %arg12: memref<4x8x128xf32, #tpu.memory_space<vmem>>) attributes {dimension_semantics = [#tpu.dimension_semantics<parallel>, #tpu.dimension_semantics<arbitrary>], iteration_bounds = array<i64: 1, 1>, scalar_prefetch = 0 : i64, scratch_operands = 0 : i64, tpu.core_type = #tpu.core_type<tc>, window_params = [{transform_indices = @transform_0, window_bounds = array<i64: 4, 8, 8>}, {transform_indices = @transform_1, window_bounds = array<i64: 4, 8, 8>}, {transform_indices = @transform_2, window_bounds = array<i64: 4, 8, 128>}, {pipeline_mode = #tpu.pipeline_mode<synchronous>, transform_indices = @transform_3, window_bounds = array<i64: 128, 256>}, {pipeline_mode = #tpu.pipeline_mode<synchronous>, transform_indices = @transform_4, window_bounds = array<i64: 1, 256>}, {pipeline_mode = #tpu.pipeline_mode<synchronous>, transform_indices = @transform_5, window_bounds = array<i64: 1, 256>}, {pipeline_mode = #tpu.pipeline_mode<synchronous>, transform_indices = @transform_6, window_bounds = array<i64: 256, 384>}, {pipeline_mode = #tpu.pipeline_mode<synchronous>, transform_indices = @transform_7, window_bounds = array<i64: 1, 384>}, {pipeline_mode = #tpu.pipeline_mode<synchronous>, transform_indices = @transform_8, window_bounds = array<i64: 128, 384>}, {pipeline_mode = #tpu.pipeline_mode<synchronous>, transform_indices = @transform_9, window_bounds = array<i64: 1, 384>}, {transform_indices = @transform_10, window_bounds = array<i64: 4, 8, 128>}]} {
    %c0_i32 = arith.constant 0 : i32
    %0 = arith.cmpi eq, %arg1, %c0_i32 : i32
    %1 = arith.extui %0 : i1 to i32
    %c0_i32_0 = arith.constant 0 : i32
    %2 = arith.cmpi ne, %1, %c0_i32_0 : i32
    scf.if %2 {
      %c0_32 = arith.constant 0 : index
      %c0_33 = arith.constant 0 : index
      %c0_34 = arith.constant 0 : index
      %59 = vector.load %arg4[%c0_32, %c0_33, %c0_34] : memref<4x8x128xf32, #tpu.memory_space<vmem>>, vector<4x8x128xf32>
      %c0_35 = arith.constant 0 : index
      %c0_36 = arith.constant 0 : index
      %c0_37 = arith.constant 0 : index
      %60 = vector.load %arg12[%c0_35, %c0_36, %c0_37] : memref<4x8x128xf32, #tpu.memory_space<vmem>>, vector<4x8x128xf32>
      tpu.vector_store %arg12[%c0_35, %c0_36, %c0_37], %59 {strides = array<i32>} : memref<4x8x128xf32, #tpu.memory_space<vmem>>, vector<4x8x128xf32>,
    } else {
    }
    %c0 = arith.constant 0 : index
    %c0_1 = arith.constant 0 : index
    %c0_2 = arith.constant 0 : index
    %3 = vector.load %arg12[%c0, %c0_1, %c0_2] : memref<4x8x128xf32, #tpu.memory_space<vmem>>, vector<4x8x128xf32>
    %4 = vector.shape_cast %3 : vector<4x8x128xf32> to vector<32x128xf32>
    %c0_3 = arith.constant 0 : index
    %c0_4 = arith.constant 0 : index
    %5 = vector.load %arg5[%c0_3, %c0_4] : memref<128x256xf32, #tpu.memory_space<vmem>>, vector<128x256xf32>
    %cst = arith.constant dense<0.000000e+00> : vector<32x256xf32>
    %6 = tpu.matmul %4, %5, %cst {dimension_numbers = #tpu.dot_dimension_numbers<[1], [0], [0], [1], [0, 0, 1, 1], [], []>} : vector<32x128xf32>, vector<128x256xf32>, vector<32x256xf32> -> vector<32x256xf32>
    %c0_5 = arith.constant 0 : index
    %c0_6 = arith.constant 0 : index
    %7 = vector.load %arg6[%c0_5, %c0_6] : memref<1x256xf32, #tpu.memory_space<vmem>>, vector<1x256xf32>
    %8 = vector.broadcast %7 : vector<1x256xf32> to vector<32x256xf32>
    %9 = arith.addf %6, %8 : vector<32x256xf32>
    %10 = vector.shape_cast %9 : vector<32x256xf32> to vector<4x8x256xf32>
    %11 = vector.extract_strided_slice %10 {offsets = [0, 0, 0], sizes = [4, 8, 128], strides = [1, 1, 1]} : vector<4x8x256xf32> to vector<4x8x128xf32>
    %12 = vector.extract_strided_slice %10 {offsets = [0, 0, 128], sizes = [4, 8, 128], strides = [1, 1, 1]} : vector<4x8x256xf32> to vector<4x8x128xf32>
    %c0_7 = arith.constant 0 : index
    %c0_8 = arith.constant 0 : index
    %c0_9 = arith.constant 0 : index
    %13 = vector.load %arg2[%c0_7, %c0_8, %c0_9] : memref<4x8x8xf32, #tpu.memory_space<vmem>>, vector<4x8x8xf32>
    "tpu.trace_start"() <{level = 10 : i32, message = "bnm,bmh->bnh"}> : () -> ()
    %cst_10 = arith.constant dense<0.000000e+00> : vector<4x8x128xf32>
    %14 = tpu.matmul %13, %11, %cst_10 {dimension_numbers = #tpu.dot_dimension_numbers<[2], [1], [1], [2], [0, 0, 0, 1, 1, 2], [0], [0]>} : vector<4x8x8xf32>, vector<4x8x128xf32>, vector<4x8x128xf32> -> vector<4x8x128xf32>
    "tpu.trace_stop"() : () -> ()
    %c0_11 = arith.constant 0 : index
    %c0_12 = arith.constant 0 : index
    %c0_13 = arith.constant 0 : index
    %15 = vector.load %arg3[%c0_11, %c0_12, %c0_13] : memref<4x8x8xf32, #tpu.memory_space<vmem>>, vector<4x8x8xf32>
    "tpu.trace_start"() <{level = 10 : i32, message = "bnm,bmh->bnh"}> : () -> ()
    %cst_14 = arith.constant dense<0.000000e+00> : vector<4x8x128xf32>
    %16 = tpu.matmul %15, %12, %cst_14 {dimension_numbers = #tpu.dot_dimension_numbers<[2], [1], [1], [2], [0, 0, 0, 1, 1, 2], [0], [0]>} : vector<4x8x8xf32>, vector<4x8x128xf32>, vector<4x8x128xf32> -> vector<4x8x128xf32>
    "tpu.trace_stop"() : () -> ()
    %17 = tpu.concatenate %14, %16 in 2 : vector<4x8x128xf32>, vector<4x8x128xf32> -> vector<4x8x256xf32>
    %c0_15 = arith.constant 0 : index
    %c0_16 = arith.constant 0 : index
    %18 = vector.load %arg7[%c0_15, %c0_16] : memref<1x256xf32, #tpu.memory_space<vmem>>, vector<1x256xf32>
    %19 = vector.shape_cast %18 : vector<1x256xf32> to vector<1x1x256xf32>
    %20 = vector.broadcast %19 : vector<1x1x256xf32> to vector<4x8x256xf32>
    %21 = arith.addf %17, %20 : vector<4x8x256xf32>
    %22 = vector.shape_cast %21 : vector<4x8x256xf32> to vector<32x256xf32>
    %c0_17 = arith.constant 0 : index
    %c0_18 = arith.constant 0 : index
    %23 = vector.load %arg8[%c0_17, %c0_18] : memref<256x384xf32, #tpu.memory_space<vmem>>, vector<256x384xf32>
    %cst_19 = arith.constant dense<0.000000e+00> : vector<32x384xf32>
    %24 = tpu.matmul %22, %23, %cst_19 {dimension_numbers = #tpu.dot_dimension_numbers<[1], [0], [0], [1], [0, 0, 1, 1], [], []>} : vector<32x256xf32>, vector<256x384xf32>, vector<32x384xf32> -> vector<32x384xf32>
    %c0_20 = arith.constant 0 : index
    %c0_21 = arith.constant 0 : index
    %25 = vector.load %arg9[%c0_20, %c0_21] : memref<1x384xf32, #tpu.memory_space<vmem>>, vector<1x384xf32>
    %26 = vector.broadcast %25 : vector<1x384xf32> to vector<32x384xf32>
    %27 = arith.addf %24, %26 : vector<32x384xf32>
    %c0_22 = arith.constant 0 : index
    %c0_23 = arith.constant 0 : index
    %28 = vector.load %arg10[%c0_22, %c0_23] : memref<128x384xf32, #tpu.memory_space<vmem>>, vector<128x384xf32>
    %cst_24 = arith.constant dense<0.000000e+00> : vector<32x384xf32>
    %29 = tpu.matmul %4, %28, %cst_24 {dimension_numbers = #tpu.dot_dimension_numbers<[1], [0], [0], [1], [0, 0, 1, 1], [], []>} : vector<32x128xf32>, vector<128x384xf32>, vector<32x384xf32> -> vector<32x384xf32>
    %c0_25 = arith.constant 0 : index
    %c0_26 = arith.constant 0 : index
    %30 = vector.load %arg11[%c0_25, %c0_26] : memref<1x384xf32, #tpu.memory_space<vmem>>, vector<1x384xf32>
    %31 = vector.broadcast %30 : vector<1x384xf32> to vector<32x384xf32>
    %32 = arith.addf %29, %31 : vector<32x384xf32>
    %33 = vector.extract_strided_slice %27 {offsets = [0, 0], sizes = [32, 128], strides = [1, 1]} : vector<32x384xf32> to vector<32x128xf32>
    %34 = vector.extract_strided_slice %27 {offsets = [0, 128], sizes = [32, 128], strides = [1, 1]} : vector<32x384xf32> to vector<32x128xf32>
    %35 = vector.extract_strided_slice %27 {offsets = [0, 256], sizes = [32, 128], strides = [1, 1]} : vector<32x384xf32> to vector<32x128xf32>
    %36 = vector.extract_strided_slice %32 {offsets = [0, 0], sizes = [32, 128], strides = [1, 1]} : vector<32x384xf32> to vector<32x128xf32>
    %37 = vector.extract_strided_slice %32 {offsets = [0, 128], sizes = [32, 128], strides = [1, 1]} : vector<32x384xf32> to vector<32x128xf32>
    %38 = vector.extract_strided_slice %32 {offsets = [0, 256], sizes = [32, 128], strides = [1, 1]} : vector<32x384xf32> to vector<32x128xf32>
    %39 = arith.addf %33, %36 : vector<32x128xf32>
    %40 = arith.negf %39 : vector<32x128xf32>
    %41 = math.exp %40 : vector<32x128xf32>
    %cst_27 = arith.constant 1.000000e+00 : f32
    %42 = vector.broadcast %cst_27 : f32 to vector<32x128xf32>
    %43 = arith.addf %42, %41 : vector<32x128xf32>
    %44 = arith.divf %42, %43 : vector<32x128xf32>
    %45 = arith.addf %34, %37 : vector<32x128xf32>
    %46 = arith.negf %45 : vector<32x128xf32>
    %47 = math.exp %46 : vector<32x128xf32>
    %cst_28 = arith.constant 1.000000e+00 : f32
    %48 = vector.broadcast %cst_28 : f32 to vector<32x128xf32>
    %49 = arith.addf %48, %47 : vector<32x128xf32>
    %50 = arith.divf %48, %49 : vector<32x128xf32>
    %51 = arith.mulf %44, %38 : vector<32x128xf32>
    %52 = arith.addf %35, %51 : vector<32x128xf32>
    %53 = math.tanh %52 : vector<32x128xf32>
    %54 = arith.subf %4, %53 : vector<32x128xf32>
    %55 = arith.mulf %50, %54 : vector<32x128xf32>
    %56 = arith.addf %53, %55 : vector<32x128xf32>
    %57 = vector.shape_cast %56 : vector<32x128xf32> to vector<4x8x128xf32>
    %c0_29 = arith.constant 0 : index
    %c0_30 = arith.constant 0 : index
    %c0_31 = arith.constant 0 : index
    %58 = vector.load %arg12[%c0_29, %c0_30, %c0_31] : memref<4x8x128xf32, #tpu.memory_space<vmem>>, vector<4x8x128xf32>
    tpu.vector_store %arg12[%c0_29, %c0_30, %c0_31], %57 {strides = array<i32>} : memref<4x8x128xf32, #tpu.memory_space<vmem>>, vector<4x8x128xf32>,
    return
  }
  func.func @transform_0(%arg0: i32, %arg1: i32) -> (i32, i32, i32) {
    %c0_i32 = arith.constant 0 : i32
    %c0_i32_0 = arith.constant 0 : i32
    %c0_i32_1 = arith.constant 0 : i32
    return %arg0, %c0_i32, %c0_i32_0 : i32, i32, i32
  }
  func.func @transform_1(%arg0: i32, %arg1: i32) -> (i32, i32, i32) {
    %c0_i32 = arith.constant 0 : i32
    %c0_i32_0 = arith.constant 0 : i32
    %c0_i32_1 = arith.constant 0 : i32
    return %arg0, %c0_i32, %c0_i32_0 : i32, i32, i32
  }
  func.func @transform_2(%arg0: i32, %arg1: i32) -> (i32, i32, i32) {
    %c0_i32 = arith.constant 0 : i32
    %c0_i32_0 = arith.constant 0 : i32
    %c0_i32_1 = arith.constant 0 : i32
    return %arg0, %c0_i32, %c0_i32_0 : i32, i32, i32
  }
  func.func @transform_3(%arg0: i32, %arg1: i32) -> (i32, i32) {
    %c0_i32 = arith.constant 0 : i32
    %c0_i32_0 = arith.constant 0 : i32
    %c0_i32_1 = arith.constant 0 : i32
    return %c0_i32, %c0_i32_0 : i32, i32
  }
  func.func @transform_4(%arg0: i32, %arg1: i32) -> (i32, i32) {
    %c0_i32 = arith.constant 0 : i32
    %c0_i32_0 = arith.constant 0 : i32
    %c0_i32_1 = arith.constant 0 : i32
    return %c0_i32, %c0_i32_0 : i32, i32
  }
  func.func @transform_5(%arg0: i32, %arg1: i32) -> (i32, i32) {
    %c0_i32 = arith.constant 0 : i32
    %c0_i32_0 = arith.constant 0 : i32
    %c0_i32_1 = arith.constant 0 : i32
    return %c0_i32, %c0_i32_0 : i32, i32
  }
  func.func @transform_6(%arg0: i32, %arg1: i32) -> (i32, i32) {
    %c0_i32 = arith.constant 0 : i32
    %c0_i32_0 = arith.constant 0 : i32
    %c0_i32_1 = arith.constant 0 : i32
    return %c0_i32, %c0_i32_0 : i32, i32
  }
  func.func @transform_7(%arg0: i32, %arg1: i32) -> (i32, i32) {
    %c0_i32 = arith.constant 0 : i32
    %c0_i32_0 = arith.constant 0 : i32
    %c0_i32_1 = arith.constant 0 : i32
    return %c0_i32, %c0_i32_0 : i32, i32
  }
  func.func @transform_8(%arg0: i32, %arg1: i32) -> (i32, i32) {
    %c0_i32 = arith.constant 0 : i32
    %c0_i32_0 = arith.constant 0 : i32
    %c0_i32_1 = arith.constant 0 : i32
    return %c0_i32, %c0_i32_0 : i32, i32
  }
  func.func @transform_9(%arg0: i32, %arg1: i32) -> (i32, i32) {
    %c0_i32 = arith.constant 0 : i32
    %c0_i32_0 = arith.constant 0 : i32
    %c0_i32_1 = arith.constant 0 : i32
    return %c0_i32, %c0_i32_0 : i32, i32
  }
  func.func @transform_10(%arg0: i32, %arg1: i32) -> (i32, i32, i32) {
    %c0_i32 = arith.constant 0 : i32
    %c0_i32_0 = arith.constant 0 : i32
    %c0_i32_1 = arith.constant 0 : i32
    return %arg0, %c0_i32, %c0_i32_0 : i32, i32, i32
  }
}

</mosaic_0001>

<llo_original>
// kernel: tpu_custom_call.1
$region0: #{tpu_custom_call.1}
  #allocation0 [shape = 'u32[]', space=smem, size = 0x4, offset = 0x4, fixed_abs, tag = 'smem constant byte address 0x4 - core index']
  #allocation1 [shape = 'u32[72,128]{1,0:T(1,128)}', space=vmem, size = 0x9000, scoped, tag = 'internal scratch']
  %s0 = inlined_call_operand.vmem [shape: f32[4,8,8], index: 0, kind: input, shape index: {}]
  %s1 = inlined_call_operand.vmem [shape: f32[4,8,8], index: 1, kind: input, shape index: {}]
  %s2 = inlined_call_operand.hbm [shape: f32[4,8,128], index: 2, kind: input, shape index: {}, may-alias: {2,10}]
  %s3 = inlined_call_operand.hbm [shape: f32[128,256], index: 3, kind: input, shape index: {}]
  %s4 = inlined_call_operand.vmem [shape: f32[1,256], index: 4, kind: input, shape index: {}]
  %s5 = inlined_call_operand.hbm [shape: f32[1,256], index: 5, kind: input, shape index: {}]
  %s6 = inlined_call_operand.hbm [shape: f32[256,384], index: 6, kind: input, shape index: {}]
  %s7 = inlined_call_operand.hbm [shape: f32[1,384], index: 7, kind: input, shape index: {}]
  %s8 = inlined_call_operand.hbm [shape: f32[128,384], index: 8, kind: input, shape index: {}]
  %s9 = inlined_call_operand.hbm [shape: f32[1,384], index: 9, kind: input, shape index: {}]
  %s10 = inlined_call_operand.hbm [shape: f32[4,8,128], index: 10, kind: output, shape index: {}, may-alias: {2,10}]
  %s11 = sld [smem:[#allocation0]]
  $region82: #{tpu_custom_call.1} parent=0
    _
  %s13 = ssub.s32 1, %s11
  %s14 = scalar_select 0, %s13, %s11
  $region1: #{tpu_custom_call.1} parent=0
    #allocation2 [shape = 'u8[16384]{0}', space=vmem, size = 0x4000, scoped, tag = 'input window, operand 2, single buffered']
    #allocation3 [shape = 's32[1]{0}', space=sflag, size = 0x4, scoped, tag = 'scoped memory for tpu_custom_call.1']
    #allocation4 [shape = 's32[1]{0}', space=sflag, size = 0x4, scoped, tag = 'scoped memory for tpu_custom_call.1']
    #allocation5 [shape = 'u8[131072]{0}', space=vmem, size = 0x20000, scoped, tag = 'input window, operand 3, single buffered']
    #allocation6 [shape = 's32[1]{0}', space=sflag, size = 0x4, scoped, tag = 'scoped memory for tpu_custom_call.1']
    #allocation7 [shape = 'u8[1024]{0}', space=vmem, size = 0x400, scoped, tag = 'input window, operand 5, single buffered']
    #allocation8 [shape = 'u8[393216]{0}', space=vmem, size = 0x60000, scoped, tag = 'input window, operand 6, single buffered']
    #allocation9 [shape = 's32[1]{0}', space=sflag, size = 0x4, scoped, tag = 'scoped memory for tpu_custom_call.1']
    #allocation10 [shape = 'u8[1536]{0}', space=vmem, size = 0x800, scoped, tag = 'input window, operand 7, single buffered']
    #allocation11 [shape = 'u8[196608]{0}', space=vmem, size = 0x30000, scoped, tag = 'input window, operand 8, single buffered']
    #allocation12 [shape = 's32[1]{0}', space=sflag, size = 0x4, scoped, tag = 'scoped memory for tpu_custom_call.1']
    #allocation13 [shape = 'u8[1536]{0}', space=vmem, size = 0x800, scoped, tag = 'input window, operand 9, single buffered']
    #allocation14 [shape = 'u8[16384]{0}', space=vmem, size = 0x4000, scoped, tag = 'output window, operand 0, single buffered']
    %15 = vsyncpa [#allocation3], 0
    %16 = vsyncpa [#allocation6], 0
    %17 = vsyncpa [#allocation9], 0
    %18 = vsyncpa [#allocation12], 0
    %19 = vsyncpa [#allocation4], 0
    // Predicated region
    $region2: #{tpu_custom_call.1} parent=1 // pred_check
      _
    $region3: #{tpu_custom_call.1} parent=1 // pred_check_branch
      %21 = sbr.rel (0) target = $region5
    $region4: #{tpu_custom_call.1} parent=1 // pred_region
      _
    $region5: #{tpu_custom_call.1} parent=1 // pred_fallthru
      _
    // Predicated region
    $region6: #{tpu_custom_call.1} parent=1 // pred_check
      _
    $region7: #{tpu_custom_call.1} parent=1 // pred_check_branch
      %23 = sbr.rel (0) target = $region9
    $region8: #{tpu_custom_call.1} parent=1 // pred_region
      _
    $region9: #{tpu_custom_call.1} parent=1 // pred_fallthru
      _
    // Predicated region
    $region10: #{tpu_custom_call.1} parent=1 // pred_check
      _
    $region11: #{tpu_custom_call.1} parent=1 // pred_check_branch
      %25 = sbr.rel (0) target = $region13
    $region12: #{tpu_custom_call.1} parent=1 // pred_region
      %27 = vsyncadd [#allocation3], 0
      %s28 = sshll.u32 %s2, 4
      %s29 = int_to_ptr.hbm [resolvable:$true] %s28
      %s30 = sshll.u32 [#allocation2], 4
      %s31 = int_to_ptr.vmem [resolvable:$true] %s30
      %36 = dma.hbm_to_vmem [thread:$0]  %s29, 512, %s31, [#allocation3], 128, 128, 8
    $region13: #{tpu_custom_call.1} parent=1 // pred_fallthru
      _
    // Predicated region
    $region14: #{tpu_custom_call.1} parent=1 // pred_check
      _
    $region15: #{tpu_custom_call.1} parent=1 // pred_check_branch
      %38 = sbr.rel (0) target = $region17
    $region16: #{tpu_custom_call.1} parent=1 // pred_region
      %40 = vsyncadd [#allocation6], 0
      %s41 = sshll.u32 %s3, 4
      %s42 = int_to_ptr.hbm [resolvable:$true] %s41
      %s43 = sshll.u32 [#allocation5], 4
      %s44 = int_to_ptr.vmem [resolvable:$true] %s43
      %49 = dma.hbm_to_vmem [thread:$0]  %s42, 4096, %s44, [#allocation6], 256, 256, 16
    $region17: #{tpu_custom_call.1} parent=1 // pred_fallthru
      _
    // Predicated region
    $region18: #{tpu_custom_call.1} parent=1 // pred_check
      _
    $region19: #{tpu_custom_call.1} parent=1 // pred_check_branch
      %51 = sbr.rel (0) target = $region21
    $region20: #{tpu_custom_call.1} parent=1 // pred_region
      _
    $region21: #{tpu_custom_call.1} parent=1 // pred_fallthru
      _
    // Predicated region
    $region22: #{tpu_custom_call.1} parent=1 // pred_check
      _
    $region23: #{tpu_custom_call.1} parent=1 // pred_check_branch
      %53 = sbr.rel (0) target = $region25
    $region24: #{tpu_custom_call.1} parent=1 // pred_region
      %55 = vsyncadd [#allocation6], 0
      %s57 = sshll.u32 %s5, 4
      %s58 = int_to_ptr.hbm [resolvable:$true] %s57
      %s59 = sshll.u32 [#allocation7], 4
      %s60 = int_to_ptr.vmem [resolvable:$true] %s59
      %62 = dma.hbm_to_vmem [thread:$0]  %s58, 32, %s60, [#allocation6]
    $region25: #{tpu_custom_call.1} parent=1 // pred_fallthru
      _
    // Predicated region
    $region26: #{tpu_custom_call.1} parent=1 // pred_check
      _
    $region27: #{tpu_custom_call.1} parent=1 // pred_check_branch
      %64 = sbr.rel (0) target = $region29
    $region28: #{tpu_custom_call.1} parent=1 // pred_region
      %66 = vsyncadd [#allocation9], 0
      %s67 = sshll.u32 %s6, 4
      %s68 = int_to_ptr.hbm [resolvable:$true] %s67
      %s69 = sshll.u32 [#allocation8], 4
      %s70 = int_to_ptr.vmem [resolvable:$true] %s69
      %75 = dma.hbm_to_vmem [thread:$0]  %s68, 12288, %s70, [#allocation9], 384, 384, 24
    $region29: #{tpu_custom_call.1} parent=1 // pred_fallthru
      _
    // Predicated region
    $region30: #{tpu_custom_call.1} parent=1 // pred_check
      _
    $region31: #{tpu_custom_call.1} parent=1 // pred_check_branch
      %77 = sbr.rel (0) target = $region33
    $region32: #{tpu_custom_call.1} parent=1 // pred_region
      %79 = vsyncadd [#allocation9], 0
      %s81 = sshll.u32 %s7, 4
      %s82 = int_to_ptr.hbm [resolvable:$true] %s81
      %s83 = sshll.u32 [#allocation10], 4
      %s84 = int_to_ptr.vmem [resolvable:$true] %s83
      %86 = dma.hbm_to_vmem [thread:$0]  %s82, 48, %s84, [#allocation9]
    $region33: #{tpu_custom_call.1} parent=1 // pred_fallthru
      _
    // Predicated region
    $region34: #{tpu_custom_call.1} parent=1 // pred_check
      _
    $region35: #{tpu_custom_call.1} parent=1 // pred_check_branch
      %88 = sbr.rel (0) target = $region37
    $region36: #{tpu_custom_call.1} parent=1 // pred_region
      %90 = vsyncadd [#allocation12], 0
      %s91 = sshll.u32 %s8, 4
      %s92 = int_to_ptr.hbm [resolvable:$true] %s91
      %s93 = sshll.u32 [#allocation11], 4
      %s94 = int_to_ptr.vmem [resolvable:$true] %s93
      %99 = dma.hbm_to_vmem [thread:$0]  %s92, 6144, %s94, [#allocation12], 384, 384, 24
    $region37: #{tpu_custom_call.1} parent=1 // pred_fallthru
      _
    // Predicated region
    $region38: #{tpu_custom_call.1} parent=1 // pred_check
      _
    $region39: #{tpu_custom_call.1} parent=1 // pred_check_branch
      %101 = sbr.rel (0) target = $region41
    $region40: #{tpu_custom_call.1} parent=1 // pred_region
      %103 = vsyncadd [#allocation12], 0
      %s105 = sshll.u32 %s9, 4
      %s106 = int_to_ptr.hbm [resolvable:$true] %s105
      %s107 = sshll.u32 [#allocation13], 4
      %s108 = int_to_ptr.vmem [resolvable:$true] %s107
      %110 = dma.hbm_to_vmem [thread:$0]  %s106, 48, %s108, [#allocation12]
    $region41: #{tpu_custom_call.1} parent=1 // pred_fallthru
      _
    // Predicated region
    $region42: #{tpu_custom_call.1} parent=1 // pred_check
      _
    $region43: #{tpu_custom_call.1} parent=1 // pred_check_branch
      %112 = sbr.rel (0) target = $region45
    $region44: #{tpu_custom_call.1} parent=1 // pred_region
      %114 = dma.done [#allocation3], 512
    $region45: #{tpu_custom_call.1} parent=1 // pred_fallthru
      _
    // Predicated region
    $region46: #{tpu_custom_call.1} parent=1 // pred_check
      _
    $region47: #{tpu_custom_call.1} parent=1 // pred_check_branch
      %116 = sbr.rel (0) target = $region49
    $region48: #{tpu_custom_call.1} parent=1 // pred_region
      %118 = dma.done [#allocation6], 4096
    $region49: #{tpu_custom_call.1} parent=1 // pred_fallthru
      _
    // Predicated region
    $region50: #{tpu_custom_call.1} parent=1 // pred_check
      _
    $region51: #{tpu_custom_call.1} parent=1 // pred_check_branch
      %120 = sbr.rel (0) target = $region53
    $region52: #{tpu_custom_call.1} parent=1 // pred_region
      %122 = dma.done [#allocation6], 32
    $region53: #{tpu_custom_call.1} parent=1 // pred_fallthru
      _
    // Predicated region
    $region54: #{tpu_custom_call.1} parent=1 // pred_check
      _
    $region55: #{tpu_custom_call.1} parent=1 // pred_check_branch
      %124 = sbr.rel (0) target = $region57
    $region56: #{tpu_custom_call.1} parent=1 // pred_region
      %126 = dma.done [#allocation9], 12288
    $region57: #{tpu_custom_call.1} parent=1 // pred_fallthru
      _
    // Predicated region
    $region58: #{tpu_custom_call.1} parent=1 // pred_check
      _
    $region59: #{tpu_custom_call.1} parent=1 // pred_check_branch
      %128 = sbr.rel (0) target = $region61
    $region60: #{tpu_custom_call.1} parent=1 // pred_region
      %130 = dma.done [#allocation9], 48
    $region61: #{tpu_custom_call.1} parent=1 // pred_fallthru
      _
    // Predicated region
    $region62: #{tpu_custom_call.1} parent=1 // pred_check
      _
    $region63: #{tpu_custom_call.1} parent=1 // pred_check_branch
      %132 = sbr.rel (0) target = $region65
    $region64: #{tpu_custom_call.1} parent=1 // pred_region
      %134 = dma.done [#allocation12], 6144
    $region65: #{tpu_custom_call.1} parent=1 // pred_fallthru
      _
    // Predicated region
    $region66: #{tpu_custom_call.1} parent=1 // pred_check
      _
    $region67: #{tpu_custom_call.1} parent=1 // pred_check_branch
      %136 = sbr.rel (0) target = $region69
    $region68: #{tpu_custom_call.1} parent=1 // pred_region
      %138 = dma.done [#allocation12], 48
    $region69: #{tpu_custom_call.1} parent=1 // pred_fallthru
      _
    %p139 = scmp.eq.s32.totalorder 0, 0
    // Predicated region
    $region70: #{tpu_custom_call.1} parent=1 // pred_check
      %p140 = pneg %p139
    $region71: #{tpu_custom_call.1} parent=1 // pred_check_branch
      %142 = sbr.rel (%p140) target = $region73
    $region72: #{tpu_custom_call.1} parent=1 // pred_region
      %v143 = vld [vmem:[#allocation2] sm:$0xff]
      %v144 = vld [vmem:[#allocation2 + $0x8] sm:$0xff]
      %v145 = vld [vmem:[#allocation2 + $0x10] sm:$0xff]
      %v146 = vld [vmem:[#allocation2 + $0x18] sm:$0xff]
      %147 = vst [vmem:[#allocation14] sm:$0xff] %v143
      %148 = vst [vmem:[#allocation14 + $0x8] sm:$0xff] %v144
      %149 = vst [vmem:[#allocation14 + $0x10] sm:$0xff] %v145
      %150 = vst [vmem:[#allocation14 + $0x18] sm:$0xff] %v146
    $region73: #{tpu_custom_call.1} parent=1 // pred_fallthru
      _
    %v151 = vld [vmem:[#allocation14] sm:$0xff]
    %v152 = vld [vmem:[#allocation14 + $0x8] sm:$0xff]
    %v153 = vld [vmem:[#allocation14 + $0x10] sm:$0xff]
    %v154 = vld [vmem:[#allocation14 + $0x18] sm:$0xff]
    %v155 = vld [vmem:[#allocation5] sm:$0xff]
    %v156 = vld [vmem:[#allocation5 + $0x8] sm:$0xff]
    %v157 = vld [vmem:[#allocation5 + $0x10] sm:$0xff]
    %v158 = vld [vmem:[#allocation5 + $0x18] sm:$0xff]
    %v159 = vld [vmem:[#allocation5 + $0x20] sm:$0xff]
    %v160 = vld [vmem:[#allocation5 + $0x28] sm:$0xff]
    %v161 = vld [vmem:[#allocation5 + $0x30] sm:$0xff]
    %v162 = vld [vmem:[#allocation5 + $0x38] sm:$0xff]
    %v163 = vld [vmem:[#allocation5 + $0x40] sm:$0xff]
    %v164 = vld [vmem:[#allocation5 + $0x48] sm:$0xff]
    %v165 = vld [vmem:[#allocation5 + $0x50] sm:$0xff]
    %v166 = vld [vmem:[#allocation5 + $0x58] sm:$0xff]
    %v167 = vld [vmem:[#allocation5 + $0x60] sm:$0xff]
    %v168 = vld [vmem:[#allocation5 + $0x68] sm:$0xff]
    %v169 = vld [vmem:[#allocation5 + $0x70] sm:$0xff]
    %v170 = vld [vmem:[#allocation5 + $0x78] sm:$0xff]
    %v171 = vld [vmem:[#allocation5 + $0x80] sm:$0xff]
    %v172 = vld [vmem:[#allocation5 + $0x88] sm:$0xff]
    %v173 = vld [vmem:[#allocation5 + $0x90] sm:$0xff]
    %v174 = vld [vmem:[#allocation5 + $0x98] sm:$0xff]
    %v175 = vld [vmem:[#allocation5 + $0xa0] sm:$0xff]
    %v176 = vld [vmem:[#allocation5 + $0xa8] sm:$0xff]
    %v177 = vld [vmem:[#allocation5 + $0xb0] sm:$0xff]
    %v178 = vld [vmem:[#allocation5 + $0xb8] sm:$0xff]
    %v179 = vld [vmem:[#allocation5 + $0xc0] sm:$0xff]
    %v180 = vld [vmem:[#allocation5 + $0xc8] sm:$0xff]
    %v181 = vld [vmem:[#allocation5 + $0xd0] sm:$0xff]
    %v182 = vld [vmem:[#allocation5 + $0xd8] sm:$0xff]
    %v183 = vld [vmem:[#allocation5 + $0xe0] sm:$0xff]
    %v184 = vld [vmem:[#allocation5 + $0xe8] sm:$0xff]
    %v185 = vld [vmem:[#allocation5 + $0xf0] sm:$0xff]
    %v186 = vld [vmem:[#allocation5 + $0xf8] sm:$0xff]
    %v187 = vld [vmem:[%s4] sm:$0x3]
    %v189 = vperm.slane %v187, 0
    %v190 = vperm.slane %v187, 1
    %193 = vmatpush.msra.mxu0 %v185
    %194 = vmatpush.msra.mxu0 %v183
    %195 = vmatpush.msra.mxu0 %v181
    %196 = vmatpush.msra.mxu0 %v179
    %197 = vmatpush.msra.mxu0 %v177
    %198 = vmatpush.msra.mxu0 %v175
    %199 = vmatpush.msra.mxu0 %v173
    %200 = vmatpush.msra.mxu0 %v171
    %201 = vmatpush.msra.mxu0 %v169
    %202 = vmatpush.msra.mxu0 %v167
    %203 = vmatpush.msra.mxu0 %v165
    %204 = vmatpush.msra.mxu0 %v163
    %205 = vmatpush.msra.mxu0 %v161
    %206 = vmatpush.msra.mxu0 %v159
    %207 = vmatpush.msra.mxu0 %v157
    %208 = vmatpush.msra.mxu0 %v155
    %209 = vmatmul.f32.gmra.mxu0 %v151
    %v210 = vpop.f32.mrf.mxu0
    %v211 = vadd.f32 %v189, %v210
    %212 = vmatmul.f32.gmra.mxu0 %v152
    %v213 = vpop.f32.mrf.mxu0
    %v214 = vadd.f32 %v189, %v213
    %215 = vmatmul.f32.gmra.mxu0 %v153
    %v216 = vpop.f32.mrf.mxu0
    %v217 = vadd.f32 %v189, %v216
    %218 = vmatmul.f32.gmra.mxu0 %v154
    %v219 = vpop.f32.mrf.mxu0
    %v220 = vadd.f32 %v189, %v219
    %221 = vdwg.mxu0
    %222 = vmatpush.msra.mxu0 %v186
    %223 = vmatpush.msra.mxu0 %v184
    %224 = vmatpush.msra.mxu0 %v182
    %225 = vmatpush.msra.mxu0 %v180
    %226 = vmatpush.msra.mxu0 %v178
    %227 = vmatpush.msra.mxu0 %v176
    %228 = vmatpush.msra.mxu0 %v174
    %229 = vmatpush.msra.mxu0 %v172
    %230 = vmatpush.msra.mxu0 %v170
    %231 = vmatpush.msra.mxu0 %v168
    %232 = vmatpush.msra.mxu0 %v166
    %233 = vmatpush.msra.mxu0 %v164
    %234 = vmatpush.msra.mxu0 %v162
    %235 = vmatpush.msra.mxu0 %v160
    %236 = vmatpush.msra.mxu0 %v158
    %237 = vmatpush.msra.mxu0 %v156
    %238 = vmatmul.f32.gmra.mxu0 %v151
    %v239 = vpop.f32.mrf.mxu0
    %v240 = vadd.f32 %v190, %v239
    %241 = vmatmul.f32.gmra.mxu0 %v152
    %v242 = vpop.f32.mrf.mxu0
    %v243 = vadd.f32 %v190, %v242
    %244 = vmatmul.f32.gmra.mxu0 %v153
    %v245 = vpop.f32.mrf.mxu0
    %v246 = vadd.f32 %v190, %v245
    %247 = vmatmul.f32.gmra.mxu0 %v154
    %v248 = vpop.f32.mrf.mxu0
    %v249 = vadd.f32 %v190, %v248
    %250 = vdwg.mxu0
    %v251 = vld [vmem:[%s0] sm:$0xff]
    %v252 = vld [vmem:[%s0 + $0x8] sm:$0xff]
    %v253 = vld [vmem:[%s0 + $0x10] sm:$0xff]
    %v254 = vld [vmem:[%s0 + $0x18] sm:$0xff]
    %vm255 = vcmask 64512
    %v257 = vsel %vm255, %v251, 0
    %259 = vmatpush.msra.mxu0 0.0
    %260 = vmatpush.msra.mxu0 0.0
    %261 = vmatpush.msra.mxu0 0.0
    %262 = vmatpush.msra.mxu0 0.0
    %263 = vmatpush.msra.mxu0 0.0
    %264 = vmatpush.msra.mxu0 0.0
    %265 = vmatpush.msra.mxu0 0.0
    %266 = vmatpush.msra.mxu0 0.0
    %267 = vmatpush.msra.mxu0 0.0
    %268 = vmatpush.msra.mxu0 0.0
    %269 = vmatpush.msra.mxu0 0.0
    %270 = vmatpush.msra.mxu0 0.0
    %271 = vmatpush.msra.mxu0 0.0
    %272 = vmatpush.msra.mxu0 0.0
    %273 = vmatpush.msra.mxu0 0.0
    %274 = vmatpush.msra.mxu0 %v211
    %275 = vmatmul.f32.gmra.mxu0 %v257
    %v276 = vpop.f32.mrf.mxu0
    %v277 = vadd.f32 0.0, %v276
    %278 = vdwg.mxu0
    %v280 = vsel %vm255, %v252, 0
    %282 = vmatpush.msra.mxu0 0.0
    %283 = vmatpush.msra.mxu0 0.0
    %284 = vmatpush.msra.mxu0 0.0
    %285 = vmatpush.msra.mxu0 0.0
    %286 = vmatpush.msra.mxu0 0.0
    %287 = vmatpush.msra.mxu0 0.0
    %288 = vmatpush.msra.mxu0 0.0
    %289 = vmatpush.msra.mxu0 0.0
    %290 = vmatpush.msra.mxu0 0.0
    %291 = vmatpush.msra.mxu0 0.0
    %292 = vmatpush.msra.mxu0 0.0
    %293 = vmatpush.msra.mxu0 0.0
    %294 = vmatpush.msra.mxu0 0.0
    %295 = vmatpush.msra.mxu0 0.0
    %296 = vmatpush.msra.mxu0 0.0
    %297 = vmatpush.msra.mxu0 %v214
    %298 = vmatmul.f32.gmra.mxu0 %v280
    %v299 = vpop.f32.mrf.mxu0
    %v300 = vadd.f32 0.0, %v299
    %301 = vdwg.mxu0
    %v303 = vsel %vm255, %v253, 0
    %305 = vmatpush.msra.mxu0 0.0
    %306 = vmatpush.msra.mxu0 0.0
    %307 = vmatpush.msra.mxu0 0.0
    %308 = vmatpush.msra.mxu0 0.0
    %309 = vmatpush.msra.mxu0 0.0
    %310 = vmatpush.msra.mxu0 0.0
    %311 = vmatpush.msra.mxu0 0.0
    %312 = vmatpush.msra.mxu0 0.0
    %313 = vmatpush.msra.mxu0 0.0
    %314 = vmatpush.msra.mxu0 0.0
    %315 = vmatpush.msra.mxu0 0.0
    %316 = vmatpush.msra.mxu0 0.0
    %317 = vmatpush.msra.mxu0 0.0
    %318 = vmatpush.msra.mxu0 0.0
    %319 = vmatpush.msra.mxu0 0.0
    %320 = vmatpush.msra.mxu0 %v217
    %321 = vmatmul.f32.gmra.mxu0 %v303
    %v322 = vpop.f32.mrf.mxu0
    %v323 = vadd.f32 0.0, %v322
    %324 = vdwg.mxu0
    %v326 = vsel %vm255, %v254, 0
    %328 = vmatpush.msra.mxu0 0.0
    %329 = vmatpush.msra.mxu0 0.0
    %330 = vmatpush.msra.mxu0 0.0
    %331 = vmatpush.msra.mxu0 0.0
    %332 = vmatpush.msra.mxu0 0.0
    %333 = vmatpush.msra.mxu0 0.0
    %334 = vmatpush.msra.mxu0 0.0
    %335 = vmatpush.msra.mxu0 0.0
    %336 = vmatpush.msra.mxu0 0.0
    %337 = vmatpush.msra.mxu0 0.0
    %338 = vmatpush.msra.mxu0 0.0
    %339 = vmatpush.msra.mxu0 0.0
    %340 = vmatpush.msra.mxu0 0.0
    %341 = vmatpush.msra.mxu0 0.0
    %342 = vmatpush.msra.mxu0 0.0
    %343 = vmatpush.msra.mxu0 %v220
    %344 = vmatmul.f32.gmra.mxu0 %v326
    %v345 = vpop.f32.mrf.mxu0
    %v346 = vadd.f32 0.0, %v345
    %347 = vdwg.mxu0
    %v348 = vld [vmem:[%s1] sm:$0xff]
    %v349 = vld [vmem:[%s1 + $0x8] sm:$0xff]
    %v350 = vld [vmem:[%s1 + $0x10] sm:$0xff]
    %v351 = vld [vmem:[%s1 + $0x18] sm:$0xff]
    %v353 = vsel %vm255, %v348, 0
    %355 = vmatpush.msra.mxu0 0.0
    %356 = vmatpush.msra.mxu0 0.0
    %357 = vmatpush.msra.mxu0 0.0
    %358 = vmatpush.msra.mxu0 0.0
    %359 = vmatpush.msra.mxu0 0.0
    %360 = vmatpush.msra.mxu0 0.0
    %361 = vmatpush.msra.mxu0 0.0
    %362 = vmatpush.msra.mxu0 0.0
    %363 = vmatpush.msra.mxu0 0.0
    %364 = vmatpush.msra.mxu0 0.0
    %365 = vmatpush.msra.mxu0 0.0
    %366 = vmatpush.msra.mxu0 0.0
    %367 = vmatpush.msra.mxu0 0.0
    %368 = vmatpush.msra.mxu0 0.0
    %369 = vmatpush.msra.mxu0 0.0
    %370 = vmatpush.msra.mxu0 %v240
    %371 = vmatmul.f32.gmra.mxu0 %v353
    %v372 = vpop.f32.mrf.mxu0
    %v373 = vadd.f32 0.0, %v372
    %374 = vdwg.mxu0
    %v376 = vsel %vm255, %v349, 0
    %378 = vmatpush.msra.mxu0 0.0
    %379 = vmatpush.msra.mxu0 0.0
    %380 = vmatpush.msra.mxu0 0.0
    %381 = vmatpush.msra.mxu0 0.0
    %382 = vmatpush.msra.mxu0 0.0
    %383 = vmatpush.msra.mxu0 0.0
    %384 = vmatpush.msra.mxu0 0.0
    %385 = vmatpush.msra.mxu0 0.0
    %386 = vmatpush.msra.mxu0 0.0
    %387 = vmatpush.msra.mxu0 0.0
    %388 = vmatpush.msra.mxu0 0.0
    %389 = vmatpush.msra.mxu0 0.0
    %390 = vmatpush.msra.mxu0 0.0
    %391 = vmatpush.msra.mxu0 0.0
    %392 = vmatpush.msra.mxu0 0.0
    %393 = vmatpush.msra.mxu0 %v243
    %394 = vmatmul.f32.gmra.mxu0 %v376
    %v395 = vpop.f32.mrf.mxu0
    %v396 = vadd.f32 0.0, %v395
    %397 = vdwg.mxu0
    %v399 = vsel %vm255, %v350, 0
    %401 = vmatpush.msra.mxu0 0.0
    %402 = vmatpush.msra.mxu0 0.0
    %403 = vmatpush.msra.mxu0 0.0
    %404 = vmatpush.msra.mxu0 0.0
    %405 = vmatpush.msra.mxu0 0.0
    %406 = vmatpush.msra.mxu0 0.0
    %407 = vmatpush.msra.mxu0 0.0
    %408 = vmatpush.msra.mxu0 0.0
    %409 = vmatpush.msra.mxu0 0.0
    %410 = vmatpush.msra.mxu0 0.0
    %411 = vmatpush.msra.mxu0 0.0
    %412 = vmatpush.msra.mxu0 0.0
    %413 = vmatpush.msra.mxu0 0.0
    %414 = vmatpush.msra.mxu0 0.0
    %415 = vmatpush.msra.mxu0 0.0
    %416 = vmatpush.msra.mxu0 %v246
    %417 = vmatmul.f32.gmra.mxu0 %v399
    %v418 = vpop.f32.mrf.mxu0
    %v419 = vadd.f32 0.0, %v418
    %420 = vdwg.mxu0
    %v422 = vsel %vm255, %v351, 0
    %424 = vmatpush.msra.mxu0 0.0
    %425 = vmatpush.msra.mxu0 0.0
    %426 = vmatpush.msra.mxu0 0.0
    %427 = vmatpush.msra.mxu0 0.0
    %428 = vmatpush.msra.mxu0 0.0
    %429 = vmatpush.msra.mxu0 0.0
    %430 = vmatpush.msra.mxu0 0.0
    %431 = vmatpush.msra.mxu0 0.0
    %432 = vmatpush.msra.mxu0 0.0
    %433 = vmatpush.msra.mxu0 0.0
    %434 = vmatpush.msra.mxu0 0.0
    %435 = vmatpush.msra.mxu0 0.0
    %436 = vmatpush.msra.mxu0 0.0
    %437 = vmatpush.msra.mxu0 0.0
    %438 = vmatpush.msra.mxu0 0.0
    %439 = vmatpush.msra.mxu0 %v249
    %440 = vmatmul.f32.gmra.mxu0 %v422
    %v441 = vpop.f32.mrf.mxu0
    %v442 = vadd.f32 0.0, %v441
    %443 = vdwg.mxu0
    %v444 = vld [vmem:[#allocation7] sm:$0x3]
    %v446 = vperm.slane %v444, 0
    %v447 = vperm.slane %v444, 1
    %v450 = vadd.f32 %v277, %v446
    %v451 = vadd.f32 %v373, %v447
    %v452 = vadd.f32 %v300, %v446
    %v453 = vadd.f32 %v396, %v447
    %v454 = vadd.f32 %v323, %v446
    %v455 = vadd.f32 %v419, %v447
    %v456 = vadd.f32 %v346, %v446
    %v457 = vadd.f32 %v442, %v447
    %v458 = vld [vmem:[#allocation8] sm:$0xff]
    %v459 = vld [vmem:[#allocation8 + $0x8] sm:$0xff]
    %v460 = vld [vmem:[#allocation8 + $0x10] sm:$0xff]
    %v461 = vld [vmem:[#allocation8 + $0x18] sm:$0xff]
    %v462 = vld [vmem:[#allocation8 + $0x20] sm:$0xff]
    %v463 = vld [vmem:[#allocation8 + $0x28] sm:$0xff]
    %v464 = vld [vmem:[#allocation8 + $0x30] sm:$0xff]
    %v465 = vld [vmem:[#allocation8 + $0x38] sm:$0xff]
    %v466 = vld [vmem:[#allocation8 + $0x40] sm:$0xff]
    %v467 = vld [vmem:[#allocation8 + $0x48] sm:$0xff]
    %v468 = vld [vmem:[#allocation8 + $0x50] sm:$0xff]
    %v469 = vld [vmem:[#allocation8 + $0x58] sm:$0xff]
    %v470 = vld [vmem:[#allocation8 + $0x60] sm:$0xff]
    %v471 = vld [vmem:[#allocation8 + $0x68] sm:$0xff]
    %v472 = vld [vmem:[#allocation8 + $0x70] sm:$0xff]
    %v473 = vld [vmem:[#allocation8 + $0x78] sm:$0xff]
    %v474 = vld [vmem:[#allocation8 + $0x80] sm:$0xff]
    %v475 = vld [vmem:[#allocation8 + $0x88] sm:$0xff]
    %v476 = vld [vmem:[#allocation8 + $0x90] sm:$0xff]
    %v477 = vld [vmem:[#allocation8 + $0x98] sm:$0xff]
    %v478 = vld [vmem:[#allocation8 + $0xa0] sm:$0xff]
    %v479 = vld [vmem:[#allocation8 + $0xa8] sm:$0xff]
    %v480 = vld [vmem:[#allocation8 + $0xb0] sm:$0xff]
    %v481 = vld [vmem:[#allocation8 + $0xb8] sm:$0xff]
    %v482 = vld [vmem:[#allocation8 + $0xc0] sm:$0xff]
    %v483 = vld [vmem:[#allocation8 + $0xc8] sm:$0xff]
    %v484 = vld [vmem:[#allocation8 + $0xd0] sm:$0xff]
    %v485 = vld [vmem:[#allocation8 + $0xd8] sm:$0xff]
    %v486 = vld [vmem:[#allocation8 + $0xe0] sm:$0xff]
    %v487 = vld [vmem:[#allocation8 + $0xe8] sm:$0xff]
    %v488 = vld [vmem:[#allocation8 + $0xf0] sm:$0xff]
    %v489 = vld [vmem:[#allocation8 + $0xf8] sm:$0xff]
    %v490 = vld [vmem:[#allocation8 + $0x100] sm:$0xff]
    %v491 = vld [vmem:[#allocation8 + $0x108] sm:$0xff]
    %v492 = vld [vmem:[#allocation8 + $0x110] sm:$0xff]
    %v493 = vld [vmem:[#allocation8 + $0x118] sm:$0xff]
    %v494 = vld [vmem:[#allocation8 + $0x120] sm:$0xff]
    %v495 = vld [vmem:[#allocation8 + $0x128] sm:$0xff]
    %v496 = vld [vmem:[#allocation8 + $0x130] sm:$0xff]
    %v497 = vld [vmem:[#allocation8 + $0x138] sm:$0xff]
    %v498 = vld [vmem:[#allocation8 + $0x140] sm:$0xff]
    %v499 = vld [vmem:[#allocation8 + $0x148] sm:$0xff]
    %v500 = vld [vmem:[#allocation8 + $0x150] sm:$0xff]
    %v501 = vld [vmem:[#allocation8 + $0x158] sm:$0xff]
    %v502 = vld [vmem:[#allocation8 + $0x160] sm:$0xff]
    %v503 = vld [vmem:[#allocation8 + $0x168] sm:$0xff]
    %v504 = vld [vmem:[#allocation8 + $0x170] sm:$0xff]
    %v505 = vld [vmem:[#allocation8 + $0x178] sm:$0xff]
    %v506 = vld [vmem:[#allocation8 + $0x180] sm:$0xff]
    %v507 = vld [vmem:[#allocation8 + $0x188] sm:$0xff]
    %v508 = vld [vmem:[#allocation8 + $0x190] sm:$0xff]
    %v509 = vld [vmem:[#allocation8 + $0x198] sm:$0xff]
    %v510 = vld [vmem:[#allocation8 + $0x1a0] sm:$0xff]
    %v511 = vld [vmem:[#allocation8 + $0x1a8] sm:$0xff]
    %v512 = vld [vmem:[#allocation8 + $0x1b0] sm:$0xff]
    %v513 = vld [vmem:[#allocation8 + $0x1b8] sm:$0xff]
    %v514 = vld [vmem:[#allocation8 + $0x1c0] sm:$0xff]
    %v515 = vld [vmem:[#allocation8 + $0x1c8] sm:$0xff]
    %v516 = vld [vmem:[#allocation8 + $0x1d0] sm:$0xff]
    %v517 = vld [vmem:[#allocation8 + $0x1d8] sm:$0xff]
    %v518 = vld [vmem:[#allocation8 + $0x1e0] sm:$0xff]
    %v519 = vld [vmem:[#allocation8 + $0x1e8] sm:$0xff]
    %v520 = vld [vmem:[#allocation8 + $0x1f0] sm:$0xff]
    %v521 = vld [vmem:[#allocation8 + $0x1f8] sm:$0xff]
    %v522 = vld [vmem:[#allocation8 + $0x200] sm:$0xff]
    %v523 = vld [vmem:[#allocation8 + $0x208] sm:$0xff]
    %v524 = vld [vmem:[#allocation8 + $0x210] sm:$0xff]
    %v525 = vld [vmem:[#allocation8 + $0x218] sm:$0xff]
    %v526 = vld [vmem:[#allocation8 + $0x220] sm:$0xff]
    %v527 = vld [vmem:[#allocation8 + $0x228] sm:$0xff]
    %v528 = vld [vmem:[#allocation8 + $0x230] sm:$0xff]
    %v529 = vld [vmem:[#allocation8 + $0x238] sm:$0xff]
    %v530 = vld [vmem:[#allocation8 + $0x240] sm:$0xff]
    %v531 = vld [vmem:[#allocation8 + $0x248] sm:$0xff]
    %v532 = vld [vmem:[#allocation8 + $0x250] sm:$0xff]
    %v533 = vld [vmem:[#allocation8 + $0x258] sm:$0xff]
    %v534 = vld [vmem:[#allocation8 + $0x260] sm:$0xff]
    %v535 = vld [vmem:[#allocation8 + $0x268] sm:$0xff]
    %v536 = vld [vmem:[#allocation8 + $0x270] sm:$0xff]
    %v537 = vld [vmem:[#allocation8 + $0x278] sm:$0xff]
    %v538 = vld [vmem:[#allocation8 + $0x280] sm:$0xff]
    %v539 = vld [vmem:[#allocation8 + $0x288] sm:$0xff]
    %v540 = vld [vmem:[#allocation8 + $0x290] sm:$0xff]
    %v541 = vld [vmem:[#allocation8 + $0x298] sm:$0xff]
    %v542 = vld [vmem:[#allocation8 + $0x2a0] sm:$0xff]
    %v543 = vld [vmem:[#allocation8 + $0x2a8] sm:$0xff]
    %v544 = vld [vmem:[#allocation8 + $0x2b0] sm:$0xff]
    %v545 = vld [vmem:[#allocation8 + $0x2b8] sm:$0xff]
    %v546 = vld [vmem:[#allocation8 + $0x2c0] sm:$0xff]
    %v547 = vld [vmem:[#allocation8 + $0x2c8] sm:$0xff]
    %v548 = vld [vmem:[#allocation8 + $0x2d0] sm:$0xff]
    %v549 = vld [vmem:[#allocation8 + $0x2d8] sm:$0xff]
    %v550 = vld [vmem:[#allocation8 + $0x2e0] sm:$0xff]
    %v551 = vld [vmem:[#allocation8 + $0x2e8] sm:$0xff]
    %v552 = vld [vmem:[#allocation8 + $0x2f0] sm:$0xff]
    %v553 = vld [vmem:[#allocation8 + $0x2f8] sm:$0xff]
    %v554 = vld [vmem:[#allocation10] sm:$0x7]
    %v556 = vperm.slane %v554, 0
    %v557 = vperm.slane %v554, 1
    %v558 = vperm.slane %v554, 2
    %562 = vmatpush.msra.mxu0 %v503
    %563 = vmatpush.msra.mxu0 %v500
    %564 = vmatpush.msra.mxu0 %v497
    %565 = vmatpush.msra.mxu0 %v494
    %566 = vmatpush.msra.mxu0 %v491
    %567 = vmatpush.msra.mxu0 %v488
    %568 = vmatpush.msra.mxu0 %v485
    %569 = vmatpush.msra.mxu0 %v482
    %570 = vmatpush.msra.mxu0 %v479
    %571 = vmatpush.msra.mxu0 %v476
    %572 = vmatpush.msra.mxu0 %v473
    %573 = vmatpush.msra.mxu0 %v470
    %574 = vmatpush.msra.mxu0 %v467
    %575 = vmatpush.msra.mxu0 %v464
    %576 = vmatpush.msra.mxu0 %v461
    %577 = vmatpush.msra.mxu0 %v458
    %578 = vmatmul.f32.gmra.mxu0 %v450
    %v579 = vpop.f32.mrf.mxu0
    %v580 = vadd.f32 %v556, %v579
    %581 = vmatmul.f32.gmra.mxu0 %v452
    %v582 = vpop.f32.mrf.mxu0
    %v583 = vadd.f32 %v556, %v582
    %584 = vmatmul.f32.gmra.mxu0 %v454
    %v585 = vpop.f32.mrf.mxu0
    %v586 = vadd.f32 %v556, %v585
    %587 = vmatmul.f32.gmra.mxu0 %v456
    %v588 = vpop.f32.mrf.mxu0
    %v589 = vadd.f32 %v556, %v588
    %590 = vdwg.mxu0
    %591 = vmatpush.msra.mxu0 %v551
    %592 = vmatpush.msra.mxu0 %v548
    %593 = vmatpush.msra.mxu0 %v545
    %594 = vmatpush.msra.mxu0 %v542
    %595 = vmatpush.msra.mxu0 %v539
    %596 = vmatpush.msra.mxu0 %v536
    %597 = vmatpush.msra.mxu0 %v533
    %598 = vmatpush.msra.mxu0 %v530
    %599 = vmatpush.msra.mxu0 %v527
    %600 = vmatpush.msra.mxu0 %v524
    %601 = vmatpush.msra.mxu0 %v521
    %602 = vmatpush.msra.mxu0 %v518
    %603 = vmatpush.msra.mxu0 %v515
    %604 = vmatpush.msra.mxu0 %v512
    %605 = vmatpush.msra.mxu0 %v509
    %606 = vmatpush.msra.mxu0 %v506
    %607 = vmatmul.f32.gmra.mxu0 %v451
    %v608 = vpop.f32.mrf.mxu0
    %v609 = vadd.f32 %v580, %v608
    %610 = vmatmul.f32.gmra.mxu0 %v453
    %v611 = vpop.f32.mrf.mxu0
    %v612 = vadd.f32 %v583, %v611
    %613 = vmatmul.f32.gmra.mxu0 %v455
    %v614 = vpop.f32.mrf.mxu0
    %v615 = vadd.f32 %v586, %v614
    %616 = vmatmul.f32.gmra.mxu0 %v457
    %v617 = vpop.f32.mrf.mxu0
    %v618 = vadd.f32 %v589, %v617
    %619 = vdwg.mxu0
    %620 = vmatpush.msra.mxu0 %v504
    %621 = vmatpush.msra.mxu0 %v501
    %622 = vmatpush.msra.mxu0 %v498
    %623 = vmatpush.msra.mxu0 %v495
    %624 = vmatpush.msra.mxu0 %v492
    %625 = vmatpush.msra.mxu0 %v489
    %626 = vmatpush.msra.mxu0 %v486
    %627 = vmatpush.msra.mxu0 %v483
    %628 = vmatpush.msra.mxu0 %v480
    %629 = vmatpush.msra.mxu0 %v477
    %630 = vmatpush.msra.mxu0 %v474
    %631 = vmatpush.msra.mxu0 %v471
    %632 = vmatpush.msra.mxu0 %v468
    %633 = vmatpush.msra.mxu0 %v465
    %634 = vmatpush.msra.mxu0 %v462
    %635 = vmatpush.msra.mxu0 %v459
    %636 = vmatmul.f32.gmra.mxu0 %v450
    %v637 = vpop.f32.mrf.mxu0
    %v638 = vadd.f32 %v557, %v637
    %639 = vmatmul.f32.gmra.mxu0 %v452
    %v640 = vpop.f32.mrf.mxu0
    %v641 = vadd.f32 %v557, %v640
    %642 = vmatmul.f32.gmra.mxu0 %v454
    %v643 = vpop.f32.mrf.mxu0
    %v644 = vadd.f32 %v557, %v643
    %645 = vmatmul.f32.gmra.mxu0 %v456
    %v646 = vpop.f32.mrf.mxu0
    %v647 = vadd.f32 %v557, %v646
    %648 = vdwg.mxu0
    %649 = vmatpush.msra.mxu0 %v552
    %650 = vmatpush.msra.mxu0 %v549
    %651 = vmatpush.msra.mxu0 %v546
    %652 = vmatpush.msra.mxu0 %v543
    %653 = vmatpush.msra.mxu0 %v540
    %654 = vmatpush.msra.mxu0 %v537
    %655 = vmatpush.msra.mxu0 %v534
    %656 = vmatpush.msra.mxu0 %v531
    %657 = vmatpush.msra.mxu0 %v528
    %658 = vmatpush.msra.mxu0 %v525
    %659 = vmatpush.msra.mxu0 %v522
    %660 = vmatpush.msra.mxu0 %v519
    %661 = vmatpush.msra.mxu0 %v516
    %662 = vmatpush.msra.mxu0 %v513
    %663 = vmatpush.msra.mxu0 %v510
    %664 = vmatpush.msra.mxu0 %v507
    %665 = vmatmul.f32.gmra.mxu0 %v451
    %v666 = vpop.f32.mrf.mxu0
    %v667 = vadd.f32 %v638, %v666
    %668 = vmatmul.f32.gmra.mxu0 %v453
    %v669 = vpop.f32.mrf.mxu0
    %v670 = vadd.f32 %v641, %v669
    %671 = vmatmul.f32.gmra.mxu0 %v455
    %v672 = vpop.f32.mrf.mxu0
    %v673 = vadd.f32 %v644, %v672
    %674 = vmatmul.f32.gmra.mxu0 %v457
    %v675 = vpop.f32.mrf.mxu0
    %v676 = vadd.f32 %v647, %v675
    %677 = vdwg.mxu0
    %678 = vmatpush.msra.mxu0 %v505
    %679 = vmatpush.msra.mxu0 %v502
    %680 = vmatpush.msra.mxu0 %v499
    %681 = vmatpush.msra.mxu0 %v496
    %682 = vmatpush.msra.mxu0 %v493
    %683 = vmatpush.msra.mxu0 %v490
    %684 = vmatpush.msra.mxu0 %v487
    %685 = vmatpush.msra.mxu0 %v484
    %686 = vmatpush.msra.mxu0 %v481
    %687 = vmatpush.msra.mxu0 %v478
    %688 = vmatpush.msra.mxu0 %v475
    %689 = vmatpush.msra.mxu0 %v472
    %690 = vmatpush.msra.mxu0 %v469
    %691 = vmatpush.msra.mxu0 %v466
    %692 = vmatpush.msra.mxu0 %v463
    %693 = vmatpush.msra.mxu0 %v460
    %694 = vmatmul.f32.gmra.mxu0 %v450
    %v695 = vpop.f32.mrf.mxu0
    %v696 = vadd.f32 %v558, %v695
    %697 = vmatmul.f32.gmra.mxu0 %v452
    %v698 = vpop.f32.mrf.mxu0
    %v699 = vadd.f32 %v558, %v698
    %700 = vmatmul.f32.gmra.mxu0 %v454
    %v701 = vpop.f32.mrf.mxu0
    %v702 = vadd.f32 %v558, %v701
    %703 = vmatmul.f32.gmra.mxu0 %v456
    %v704 = vpop.f32.mrf.mxu0
    %v705 = vadd.f32 %v558, %v704
    %706 = vdwg.mxu0
    %707 = vmatpush.msra.mxu0 %v553
    %708 = vmatpush.msra.mxu0 %v550
    %709 = vmatpush.msra.mxu0 %v547
    %710 = vmatpush.msra.mxu0 %v544
    %711 = vmatpush.msra.mxu0 %v541
    %712 = vmatpush.msra.mxu0 %v538
    %713 = vmatpush.msra.mxu0 %v535
    %714 = vmatpush.msra.mxu0 %v532
    %715 = vmatpush.msra.mxu0 %v529
    %716 = vmatpush.msra.mxu0 %v526
    %717 = vmatpush.msra.mxu0 %v523
    %718 = vmatpush.msra.mxu0 %v520
    %719 = vmatpush.msra.mxu0 %v517
    %720 = vmatpush.msra.mxu0 %v514
    %721 = vmatpush.msra.mxu0 %v511
    %722 = vmatpush.msra.mxu0 %v508
    %723 = vmatmul.f32.gmra.mxu0 %v451
    %v724 = vpop.f32.mrf.mxu0
    %v725 = vadd.f32 %v696, %v724
    %726 = vmatmul.f32.gmra.mxu0 %v453
    %v727 = vpop.f32.mrf.mxu0
    %v728 = vadd.f32 %v699, %v727
    %729 = vmatmul.f32.gmra.mxu0 %v455
    %v730 = vpop.f32.mrf.mxu0
    %v731 = vadd.f32 %v702, %v730
    %732 = vmatmul.f32.gmra.mxu0 %v457
    %v733 = vpop.f32.mrf.mxu0
    %v734 = vadd.f32 %v705, %v733
    %735 = vdwg.mxu0
    %v736 = vld [vmem:[#allocation11] sm:$0xff]
    %v737 = vld [vmem:[#allocation11 + $0x8] sm:$0xff]
    %v738 = vld [vmem:[#allocation11 + $0x10] sm:$0xff]
    %v739 = vld [vmem:[#allocation11 + $0x18] sm:$0xff]
    %v740 = vld [vmem:[#allocation11 + $0x20] sm:$0xff]
    %v741 = vld [vmem:[#allocation11 + $0x28] sm:$0xff]
    %v742 = vld [vmem:[#allocation11 + $0x30] sm:$0xff]
    %v743 = vld [vmem:[#allocation11 + $0x38] sm:$0xff]
    %v744 = vld [vmem:[#allocation11 + $0x40] sm:$0xff]
    %v745 = vld [vmem:[#allocation11 + $0x48] sm:$0xff]
    %v746 = vld [vmem:[#allocation11 + $0x50] sm:$0xff]
    %v747 = vld [vmem:[#allocation11 + $0x58] sm:$0xff]
    %v748 = vld [vmem:[#allocation11 + $0x60] sm:$0xff]
    %v749 = vld [vmem:[#allocation11 + $0x68] sm:$0xff]
    %v750 = vld [vmem:[#allocation11 + $0x70] sm:$0xff]
    %v751 = vld [vmem:[#allocation11 + $0x78] sm:$0xff]
    %v752 = vld [vmem:[#allocation11 + $0x80] sm:$0xff]
    %v753 = vld [vmem:[#allocation11 + $0x88] sm:$0xff]
    %v754 = vld [vmem:[#allocation11 + $0x90] sm:$0xff]
    %v755 = vld [vmem:[#allocation11 + $0x98] sm:$0xff]
    %v756 = vld [vmem:[#allocation11 + $0xa0] sm:$0xff]
    %v757 = vld [vmem:[#allocation11 + $0xa8] sm:$0xff]
    %v758 = vld [vmem:[#allocation11 + $0xb0] sm:$0xff]
    %v759 = vld [vmem:[#allocation11 + $0xb8] sm:$0xff]
    %v760 = vld [vmem:[#allocation11 + $0xc0] sm:$0xff]
    %v761 = vld [vmem:[#allocation11 + $0xc8] sm:$0xff]
    %v762 = vld [vmem:[#allocation11 + $0xd0] sm:$0xff]
    %v763 = vld [vmem:[#allocation11 + $0xd8] sm:$0xff]
    %v764 = vld [vmem:[#allocation11 + $0xe0] sm:$0xff]
    %v765 = vld [vmem:[#allocation11 + $0xe8] sm:$0xff]
    %v766 = vld [vmem:[#allocation11 + $0xf0] sm:$0xff]
    %v767 = vld [vmem:[#allocation11 + $0xf8] sm:$0xff]
    %v768 = vld [vmem:[#allocation11 + $0x100] sm:$0xff]
    %v769 = vld [vmem:[#allocation11 + $0x108] sm:$0xff]
    %v770 = vld [vmem:[#allocation11 + $0x110] sm:$0xff]
    %v771 = vld [vmem:[#allocation11 + $0x118] sm:$0xff]
    %v772 = vld [vmem:[#allocation11 + $0x120] sm:$0xff]
    %v773 = vld [vmem:[#allocation11 + $0x128] sm:$0xff]
    %v774 = vld [vmem:[#allocation11 + $0x130] sm:$0xff]
    %v775 = vld [vmem:[#allocation11 + $0x138] sm:$0xff]
    %v776 = vld [vmem:[#allocation11 + $0x140] sm:$0xff]
    %v777 = vld [vmem:[#allocation11 + $0x148] sm:$0xff]
    %v778 = vld [vmem:[#allocation11 + $0x150] sm:$0xff]
    %v779 = vld [vmem:[#allocation11 + $0x158] sm:$0xff]
    %v780 = vld [vmem:[#allocation11 + $0x160] sm:$0xff]
    %v781 = vld [vmem:[#allocation11 + $0x168] sm:$0xff]
    %v782 = vld [vmem:[#allocation11 + $0x170] sm:$0xff]
    %v783 = vld [vmem:[#allocation11 + $0x178] sm:$0xff]
    %v784 = vld [vmem:[#allocation13] sm:$0x7]
    %v786 = vperm.slane %v784, 0
    %v787 = vperm.slane %v784, 1
    %v788 = vperm.slane %v784, 2
    %792 = vmatpush.msra.mxu0 %v781
    %793 = vmatpush.msra.mxu0 %v778
    %794 = vmatpush.msra.mxu0 %v775
    %795 = vmatpush.msra.mxu0 %v772
    %796 = vmatpush.msra.mxu0 %v769
    %797 = vmatpush.msra.mxu0 %v766
    %798 = vmatpush.msra.mxu0 %v763
    %799 = vmatpush.msra.mxu0 %v760
    %800 = vmatpush.msra.mxu0 %v757
    %801 = vmatpush.msra.mxu0 %v754
    %802 = vmatpush.msra.mxu0 %v751
    %803 = vmatpush.msra.mxu0 %v748
    %804 = vmatpush.msra.mxu0 %v745
    %805 = vmatpush.msra.mxu0 %v742
    %806 = vmatpush.msra.mxu0 %v739
    %807 = vmatpush.msra.mxu0 %v736
    %808 = vmatmul.f32.gmra.mxu0 %v151
    %v809 = vpop.f32.mrf.mxu0
    %v810 = vadd.f32 %v786, %v809
    %811 = vmatmul.f32.gmra.mxu0 %v152
    %v812 = vpop.f32.mrf.mxu0
    %v813 = vadd.f32 %v786, %v812
    %814 = vmatmul.f32.gmra.mxu0 %v153
    %v815 = vpop.f32.mrf.mxu0
    %v816 = vadd.f32 %v786, %v815
    %817 = vmatmul.f32.gmra.mxu0 %v154
    %v818 = vpop.f32.mrf.mxu0
    %v819 = vadd.f32 %v786, %v818
    %820 = vdwg.mxu0
    %821 = vmatpush.msra.mxu0 %v782
    %822 = vmatpush.msra.mxu0 %v779
    %823 = vmatpush.msra.mxu0 %v776
    %824 = vmatpush.msra.mxu0 %v773
    %825 = vmatpush.msra.mxu0 %v770
    %826 = vmatpush.msra.mxu0 %v767
    %827 = vmatpush.msra.mxu0 %v764
    %828 = vmatpush.msra.mxu0 %v761
    %829 = vmatpush.msra.mxu0 %v758
    %830 = vmatpush.msra.mxu0 %v755
    %831 = vmatpush.msra.mxu0 %v752
    %832 = vmatpush.msra.mxu0 %v749
    %833 = vmatpush.msra.mxu0 %v746
    %834 = vmatpush.msra.mxu0 %v743
    %835 = vmatpush.msra.mxu0 %v740
    %836 = vmatpush.msra.mxu0 %v737
    %837 = vmatmul.f32.gmra.mxu0 %v151
    %v838 = vpop.f32.mrf.mxu0
    %v839 = vadd.f32 %v787, %v838
    %840 = vmatmul.f32.gmra.mxu0 %v152
    %v841 = vpop.f32.mrf.mxu0
    %v842 = vadd.f32 %v787, %v841
    %843 = vmatmul.f32.gmra.mxu0 %v153
    %v844 = vpop.f32.mrf.mxu0
    %v845 = vadd.f32 %v787, %v844
    %846 = vmatmul.f32.gmra.mxu0 %v154
    %v847 = vpop.f32.mrf.mxu0
    %v848 = vadd.f32 %v787, %v847
    %849 = vdwg.mxu0
    %850 = vmatpush.msra.mxu0 %v783
    %851 = vmatpush.msra.mxu0 %v780
    %852 = vmatpush.msra.mxu0 %v777
    %853 = vmatpush.msra.mxu0 %v774
    %854 = vmatpush.msra.mxu0 %v771
    %855 = vmatpush.msra.mxu0 %v768
    %856 = vmatpush.msra.mxu0 %v765
    %857 = vmatpush.msra.mxu0 %v762
    %858 = vmatpush.msra.mxu0 %v759
    %859 = vmatpush.msra.mxu0 %v756
    %860 = vmatpush.msra.mxu0 %v753
    %861 = vmatpush.msra.mxu0 %v750
    %862 = vmatpush.msra.mxu0 %v747
    %863 = vmatpush.msra.mxu0 %v744
    %864 = vmatpush.msra.mxu0 %v741
    %865 = vmatpush.msra.mxu0 %v738
    %866 = vmatmul.f32.gmra.mxu0 %v151
    %v867 = vpop.f32.mrf.mxu0
    %v868 = vadd.f32 %v788, %v867
    %869 = vmatmul.f32.gmra.mxu0 %v152
    %v870 = vpop.f32.mrf.mxu0
    %v871 = vadd.f32 %v788, %v870
    %872 = vmatmul.f32.gmra.mxu0 %v153
    %v873 = vpop.f32.mrf.mxu0
    %v874 = vadd.f32 %v788, %v873
    %875 = vmatmul.f32.gmra.mxu0 %v154
    %v876 = vpop.f32.mrf.mxu0
    %v877 = vadd.f32 %v788, %v876
    %878 = vdwg.mxu0
    %v879 = vadd.f32 %v609, %v810
    %v880 = vadd.f32 %v612, %v813
    %v881 = vadd.f32 %v615, %v816
    %v882 = vadd.f32 %v618, %v819
    %v883 = vxor.u32 %v879, 2147483648
    %v884 = vxor.u32 %v880, 2147483648
    %v885 = vxor.u32 %v881, 2147483648
    %v886 = vxor.u32 %v882, 2147483648
    %v887 = vmul.f32 %v883, 1.442695
    %v888 = vpow.pop %v887
    %v889 = vmul.f32 %v884, 1.442695
    %v890 = vpow.pop %v889
    %v891 = vmul.f32 %v885, 1.442695
    %v892 = vpow.pop %v891
    %v893 = vmul.f32 %v886, 1.442695
    %v894 = vpow.pop %v893
    %v895 = vadd.f32 %v888, 1.0
    %v896 = vadd.f32 %v890, 1.0
    %v897 = vadd.f32 %v892, 1.0
    %v898 = vadd.f32 %v894, 1.0
    %v899 = vrcp.pop %v895
    %v900 = vmul.f32 %v895, %v899
    %v901 = vsub.f32 1.0, %v900
    %v902 = vmul.f32 %v899, %v901
    %v903 = vadd.f32 %v899, %v902
    %vm904 = vweird.f32 %v895
    %vm905 = vweird.f32 %v899
    %vm906 = vmor %vm904, %vm905
    %v907 = vsel %vm906, %v899, %v903
    %v908 = vand.u32 2147483647, %v895
    %vm909 = vcmp.eq.f32.partialorder %v908, 8.507059e+37
    %v910 = vand.u32 %v895, 2147483648
    %v911 = vor.u32 1.1754944e-38, %v910
    %v912 = vsel %vm909, %v911, %v907
    %v913 = vmul.f32 1.0, %v912
    %v914 = vrcp.pop %v896
    %v915 = vmul.f32 %v896, %v914
    %v916 = vsub.f32 1.0, %v915
    %v917 = vmul.f32 %v914, %v916
    %v918 = vadd.f32 %v914, %v917
    %vm919 = vweird.f32 %v896
    %vm920 = vweird.f32 %v914
    %vm921 = vmor %vm919, %vm920
    %v922 = vsel %vm921, %v914, %v918
    %v923 = vand.u32 2147483647, %v896
    %vm924 = vcmp.eq.f32.partialorder %v923, 8.507059e+37
    %v925 = vand.u32 %v896, 2147483648
    %v926 = vor.u32 1.1754944e-38, %v925
    %v927 = vsel %vm924, %v926, %v922
    %v928 = vmul.f32 1.0, %v927
    %v929 = vrcp.pop %v897
    %v930 = vmul.f32 %v897, %v929
    %v931 = vsub.f32 1.0, %v930
    %v932 = vmul.f32 %v929, %v931
    %v933 = vadd.f32 %v929, %v932
    %vm934 = vweird.f32 %v897
    %vm935 = vweird.f32 %v929
    %vm936 = vmor %vm934, %vm935
    %v937 = vsel %vm936, %v929, %v933
    %v938 = vand.u32 2147483647, %v897
    %vm939 = vcmp.eq.f32.partialorder %v938, 8.507059e+37
    %v940 = vand.u32 %v897, 2147483648
    %v941 = vor.u32 1.1754944e-38, %v940
    %v942 = vsel %vm939, %v941, %v937
    %v943 = vmul.f32 1.0, %v942
    %v944 = vrcp.pop %v898
    %v945 = vmul.f32 %v898, %v944
    %v946 = vsub.f32 1.0, %v945
    %v947 = vmul.f32 %v944, %v946
    %v948 = vadd.f32 %v944, %v947
    %vm949 = vweird.f32 %v898
    %vm950 = vweird.f32 %v944
    %vm951 = vmor %vm949, %vm950
    %v952 = vsel %vm951, %v944, %v948
    %v953 = vand.u32 2147483647, %v898
    %vm954 = vcmp.eq.f32.partialorder %v953, 8.507059e+37
    %v955 = vand.u32 %v898, 2147483648
    %v956 = vor.u32 1.1754944e-38, %v955
    %v957 = vsel %vm954, %v956, %v952
    %v958 = vmul.f32 1.0, %v957
    %v959 = vadd.f32 %v667, %v839
    %v960 = vadd.f32 %v670, %v842
    %v961 = vadd.f32 %v673, %v845
    %v962 = vadd.f32 %v676, %v848
    %v963 = vxor.u32 %v959, 2147483648
    %v964 = vxor.u32 %v960, 2147483648
    %v965 = vxor.u32 %v961, 2147483648
    %v966 = vxor.u32 %v962, 2147483648
    %v967 = vmul.f32 %v963, 1.442695
    %v968 = vpow.pop %v967
    %v969 = vmul.f32 %v964, 1.442695
    %v970 = vpow.pop %v969
    %v971 = vmul.f32 %v965, 1.442695
    %v972 = vpow.pop %v971
    %v973 = vmul.f32 %v966, 1.442695
    %v974 = vpow.pop %v973
    %v975 = vadd.f32 %v968, 1.0
    %v976 = vadd.f32 %v970, 1.0
    %v977 = vadd.f32 %v972, 1.0
    %v978 = vadd.f32 %v974, 1.0
    %v979 = vrcp.pop %v975
    %v980 = vmul.f32 %v975, %v979
    %v981 = vsub.f32 1.0, %v980
    %v982 = vmul.f32 %v979, %v981
    %v983 = vadd.f32 %v979, %v982
    %vm984 = vweird.f32 %v975
    %vm985 = vweird.f32 %v979
    %vm986 = vmor %vm984, %vm985
    %v987 = vsel %vm986, %v979, %v983
    %v988 = vand.u32 2147483647, %v975
    %vm989 = vcmp.eq.f32.partialorder %v988, 8.507059e+37
    %v990 = vand.u32 %v975, 2147483648
    %v991 = vor.u32 1.1754944e-38, %v990
    %v992 = vsel %vm989, %v991, %v987
    %v993 = vmul.f32 1.0, %v992
    %v994 = vrcp.pop %v976
    %v995 = vmul.f32 %v976, %v994
    %v996 = vsub.f32 1.0, %v995
    %v997 = vmul.f32 %v994, %v996
    %v998 = vadd.f32 %v994, %v997
    %vm999 = vweird.f32 %v976
    %vm1000 = vweird.f32 %v994
    %vm1001 = vmor %vm999, %vm1000
    %v1002 = vsel %vm1001, %v994, %v998
    %v1003 = vand.u32 2147483647, %v976
    %vm1004 = vcmp.eq.f32.partialorder %v1003, 8.507059e+37
    %v1005 = vand.u32 %v976, 2147483648
    %v1006 = vor.u32 1.1754944e-38, %v1005
    %v1007 = vsel %vm1004, %v1006, %v1002
    %v1008 = vmul.f32 1.0, %v1007
    %v1009 = vrcp.pop %v977
    %v1010 = vmul.f32 %v977, %v1009
    %v1011 = vsub.f32 1.0, %v1010
    %v1012 = vmul.f32 %v1009, %v1011
    %v1013 = vadd.f32 %v1009, %v1012
    %vm1014 = vweird.f32 %v977
    %vm1015 = vweird.f32 %v1009
    %vm1016 = vmor %vm1014, %vm1015
    %v1017 = vsel %vm1016, %v1009, %v1013
    %v1018 = vand.u32 2147483647, %v977
    %vm1019 = vcmp.eq.f32.partialorder %v1018, 8.507059e+37
    %v1020 = vand.u32 %v977, 2147483648
    %v1021 = vor.u32 1.1754944e-38, %v1020
    %v1022 = vsel %vm1019, %v1021, %v1017
    %v1023 = vmul.f32 1.0, %v1022
    %v1024 = vrcp.pop %v978
    %v1025 = vmul.f32 %v978, %v1024
    %v1026 = vsub.f32 1.0, %v1025
    %v1027 = vmul.f32 %v1024, %v1026
    %v1028 = vadd.f32 %v1024, %v1027
    %vm1029 = vweird.f32 %v978
    %vm1030 = vweird.f32 %v1024
    %vm1031 = vmor %vm1029, %vm1030
    %v1032 = vsel %vm1031, %v1024, %v1028
    %v1033 = vand.u32 2147483647, %v978
    %vm1034 = vcmp.eq.f32.partialorder %v1033, 8.507059e+37
    %v1035 = vand.u32 %v978, 2147483648
    %v1036 = vor.u32 1.1754944e-38, %v1035
    %v1037 = vsel %vm1034, %v1036, %v1032
    %v1038 = vmul.f32 1.0, %v1037
    %v1039 = vmul.f32 %v913, %v868
    %v1040 = vmul.f32 %v928, %v871
    %v1041 = vmul.f32 %v943, %v874
    %v1042 = vmul.f32 %v958, %v877
    %v1043 = vadd.f32 %v725, %v1039
    %v1044 = vadd.f32 %v728, %v1040
    %v1045 = vadd.f32 %v731, %v1041
    %v1046 = vadd.f32 %v734, %v1042
    %v1047 = vtanh.pop %v1043
    %v1048 = vtanh.pop %v1044
    %v1049 = vtanh.pop %v1045
    %v1050 = vtanh.pop %v1046
    %v1051 = vsub.f32 %v151, %v1047
    %v1052 = vsub.f32 %v152, %v1048
    %v1053 = vsub.f32 %v153, %v1049
    %v1054 = vsub.f32 %v154, %v1050
    %v1055 = vmul.f32 %v993, %v1051
    %v1056 = vmul.f32 %v1008, %v1052
    %v1057 = vmul.f32 %v1023, %v1053
    %v1058 = vmul.f32 %v1038, %v1054
    %v1059 = vadd.f32 %v1047, %v1055
    %v1060 = vadd.f32 %v1048, %v1056
    %v1061 = vadd.f32 %v1049, %v1057
    %v1062 = vadd.f32 %v1050, %v1058
    %1063 = vst [vmem:[#allocation14] sm:$0xff] %v1059
    %1064 = vst [vmem:[#allocation14 + $0x8] sm:$0xff] %v1060
    %1065 = vst [vmem:[#allocation14 + $0x10] sm:$0xff] %v1061
    %1066 = vst [vmem:[#allocation14 + $0x18] sm:$0xff] %v1062
    // Predicated region
    $region74: #{tpu_custom_call.1} parent=1 // pred_check
      _
    $region75: #{tpu_custom_call.1} parent=1 // pred_check_branch
      %1068 = sbr.rel (0) target = $region77
    $region76: #{tpu_custom_call.1} parent=1 // pred_region
      %1070 = vsyncadd [#allocation4], 0
      %s1071 = sshll.u32 [#allocation14], 4
      %s1072 = int_to_ptr.vmem [resolvable:$true] %s1071
      %s1073 = sshll.u32 %s10, 4
      %s1074 = int_to_ptr.hbm [resolvable:$true] %s1073
      %1079 = dma.vmem_to_hbm [thread:$0]  %s1072, 512, %s1074, [#allocation4], 128, 128, 8
    $region77: #{tpu_custom_call.1} parent=1 // pred_fallthru
      _
    // Predicated region
    $region78: #{tpu_custom_call.1} parent=1 // pred_check
      _
    $region79: #{tpu_custom_call.1} parent=1 // pred_check_branch
      %1081 = sbr.rel (0) target = $region81
    $region80: #{tpu_custom_call.1} parent=1 // pred_region
      %1083 = dma.done [#allocation4], 512
    $region81: #{tpu_custom_call.1} parent=1 // pred_fallthru
      _
    %1084 = vsyncpa [#allocation3], 1
    %1085 = vsyncpa [#allocation6], 1
    %1086 = vsyncpa [#allocation9], 1
    %1087 = vsyncpa [#allocation12], 1
    %1088 = vsyncpa [#allocation4], 1

</llo_original>
